<compile_context>
chip_gen: v7x
topology: tpu7x:2x2x1
jax: 0.10.0
libtpu: 0.0.40
codegen_flags: <defaults>
</compile_context>

<pallas_src>
import functools

import numpy as np
import jax
import jax.numpy as jnp
from jax.experimental import pallas as pl
from jax.experimental.pallas import tpu as pltpu

TM_TARGET = 2048   # target flat slab rows (output pixels + halo col) per grid step


def _round_up(x, m):
    return ((x + m - 1) // m) * m


@functools.lru_cache(maxsize=None)
def _vmem_limit_bytes():
    """Scoped-VMEM limit: 96 MiB on 128 MiB chips, 3/4 of capacity on v7x."""
    try:
        cap = int(pltpu.get_tpu_info().vmem_capacity_bytes)
        return int(min(96 * 1024 * 1024, (3 * cap) // 4))
    except Exception:
        return None  # compiler default


# -----------------------------------------------------------------------------
# Fused 3x3/s2 conv (+bias, ReLU) + 1x1 head kernel with in-kernel tap shift
# -----------------------------------------------------------------------------
def _conv_head_kernel(xc_ref, w0_ref, w1_ref, b_ref, wh_ref, bh_ref, *rest,
                      with_feat):
    zs_ref = rest[-1]           # VMEM scratch (tm + 8, Co) f32
    outs = rest[:-1]
    tm = xc_ref.shape[0]
    co = w0_ref.shape[1]

    xc = xc_ref[...]                                              # (tm, 6C) bf16
    # taps dx in {0, 1}: aligned with the output pixel's own slab row
    z = jnp.dot(xc, w0_ref[...], preferred_element_type=jnp.float32)
    # taps dx == 2: live in the NEXT slab row (next column pair).  Compute on
    # every row, then shift up by one row through the VMEM scratch; the extra
    # halo-column row per image row absorbs the shift so nothing leaks across
    # image rows or grid blocks.
    zs = jnp.dot(xc, w1_ref[...], preferred_element_type=jnp.float32)
    zs_ref[pl.ds(0, tm), :] = zs
    zs_ref[pl.ds(tm, 8), :] = jnp.zeros((8, co), jnp.float32)
    zsh = zs_ref[pl.ds(1, tm), :]                                 # zs[j+1]

    feat = jnp.maximum(z + zsh + b_ref[...], 0.0)                 # (tm, Co) f32
    logits = jnp.dot(feat.astype(wh_ref.dtype), wh_ref[...],
                     preferred_element_type=jnp.float32) + bh_ref[...]

    if with_feat:
        outs[0][...] = feat.astype(jnp.bfloat16)
        outs[1][...] = logits
    else:
        outs[0][...] = logits


def _pick_rows_per_step(rows_total, w_ent):
    """Image rows per grid step: multiple of 8, ~TM_TARGET flat rows per step,
    and >= 2 grid steps when possible (v7x megacore sharding)."""
    r = max(8, ((TM_TARGET // w_ent) // 8) * 8)
    if rows_total >= 16:
        r = min(r, max(8, ((rows_total // 2) // 8) * 8))
    return min(r, _round_up(rows_total, 8))


def conv3x3s2_relu_head(x_nhwc, w3, b, wh, bh, *, with_feat):
    """feat = relu(conv3x3/s2/p1(x) + b); logits = feat @ wh + bh.

    x_nhwc : (B, H, W, C)           w3 : (3, 3, C, Co)   b  : (Co,)
    wh     : (Co, Kc) 1x1 head      bh : (Kc,)
    Returns (feat (B,Ho,Wo,Co) bf16, logits (B,Ho,Wo,Kc) f32) if with_feat,
    else logits only.
    """
    B, H, W, C = x_nhwc.shape
    Ho, Wo = H // 2, W // 2
    Co = w3.shape[-1]
    Kc = wh.shape[-1]
    w_ent = Wo + 1                      # slab entries per image row (last = halo)

    # --- packed bf16 tap slab (built once, read once by the kernel) ---------
    xb = x_nhwc.astype(jnp.bfloat16)
    xp = jnp.pad(xb, ((0, 0), (1, 1), (1, 1), (0, 0)))
    taps = []
    for dy in range(3):
        for q in range(2):
            taps.append(xp[:, dy:dy + 2 * Ho - 1:2, q:q + 2 * Wo + 1:2, :])
    sc = jnp.concatenate(taps, axis=-1)                 # (B, Ho, Wo+1, 6C) bf16
    Mr = B * Ho * w_ent
    scf = sc.reshape(Mr, 6 * C)

    R = _pick_rows_per_step(B * Ho, w_ent)
    rows_pad = _round_up(B * Ho, R)
    Mr_pad = rows_pad * w_ent
    tm = R * w_ent
    if Mr_pad != Mr:
        scf = jnp.pad(scf, ((0, Mr_pad - Mr), (0, 0)))

    # W0 covers the dx in {0,1} taps; W1 the dx == 2 taps (only the even column
    # of the next pair is a real dx=2 tap, so the odd-column slots are zero).
    w0 = jnp.concatenate([w3[dy, q] for dy in range(3) for q in range(2)],
                         axis=0).astype(jnp.bfloat16)            # (6C, Co)
    zero = jnp.zeros_like(w3[0, 0])
    w1 = jnp.concatenate([w3[dy, 2] if q == 0 else zero
                          for dy in range(3) for q in range(2)],
                         axis=0).astype(jnp.bfloat16)            # (6C, Co)
    whb = wh.astype(jnp.bfloat16)
    b2 = b.reshape(1, Co).astype(jnp.float32)
    bh2 = bh.reshape(1, Kc).astype(jnp.float32)

    out_shape, out_specs = [], []
    if with_feat:
        out_shape.append(jax.ShapeDtypeStruct((Mr_pad, Co), jnp.bfloat16))
        out_specs.append(pl.BlockSpec((tm, Co), lambda i: (i, 0)))
    out_shape.append(jax.ShapeDtypeStruct((Mr_pad, Kc), jnp.float32))
    out_specs.append(pl.BlockSpec((tm, Kc), lambda i: (i, 0)))

    flops = 2 * Mr_pad * 6 * C * Co * 2 + 2 * Mr_pad * Co * Kc
    bytes_accessed = (scf.size * 2 + w0.size * 2 + w1.size * 2 + whb.size * 2
                      + b2.size * 4 + bh2.size * 4 + Mr_pad * Kc * 4
                      + (Mr_pad * Co * 2 if with_feat else 0))

    outs = pl.pallas_call(
        functools.partial(_conv_head_kernel, with_feat=with_feat),
        out_shape=tuple(out_shape),
        grid=(Mr_pad // tm,),
        in_specs=[
            pl.BlockSpec((tm, 6 * C), lambda i: (i, 0)),   # streamed tap slab
            pl.BlockSpec((6 * C, Co), lambda i: (0, 0)),   # resident conv weights
            pl.BlockSpec((6 * C, Co), lambda i: (0, 0)),
            pl.BlockSpec((1, Co), lambda i: (0, 0)),       # resident conv bias
            pl.BlockSpec((Co, Kc), lambda i: (0, 0)),      # resident head weight
            pl.BlockSpec((1, Kc), lambda i: (0, 0)),       # resident head bias
        ],
        out_specs=tuple(out_specs),
        scratch_shapes=[pltpu.VMEM((tm + 8, Co), jnp.float32)],
        compiler_params=pltpu.CompilerParams(
            dimension_semantics=("parallel",),
            vmem_limit_bytes=_vmem_limit_bytes()),
        cost_estimate=pl.CostEstimate(flops=flops, transcendentals=0,
                                      bytes_accessed=bytes_accessed),
    )(scf, w0, w1, b2, whb, bh2)

    if not isinstance(outs, (tuple, list)):
        outs = (outs,)

    def _unslab(a):               # drop row padding + halo column (fused by XLA)
        return a[:Mr].reshape(B, Ho, w_ent, -1)[:, :, :Wo, :]

    logits = _unslab(outs[-1])                          # (B, Ho, Wo, Kc) f32
    if with_feat:
        return _unslab(outs[0]), logits                 # feat bf16, logits f32
    return logits


# -----------------------------------------------------------------------------
# Fused bilinear upsample (vertical + horizontal matmuls in one pallas_call)
# -----------------------------------------------------------------------------
def _upsample_kernel(x_ref, ry_ref, rxt_ref, o_ref):
    t = jnp.dot(ry_ref[...], x_ref[0], preferred_element_type=jnp.float32)
    o_ref[0] = jnp.dot(t, rxt_ref[...], preferred_element_type=jnp.float32)


def _interp_rows(in_size, out_size):
    """Row weights matching F.interpolate(mode='bilinear', align_corners=False)."""
    i = np.arange(out_size, dtype=np.float64)
    src = (i + 0.5) * (in_size / out_size) - 0.5
    src = np.maximum(src, 0.0)
    i0 = np.minimum(np.floor(src).astype(np.int64), in_size - 1)
    i1 = np.minimum(i0 + 1, in_size - 1)
    w1 = src - i0
    w0 = 1.0 - w1
    r = np.zeros((out_size, in_size), np.float32)
    r[np.arange(out_size), i0] += w0.astype(np.float32)
    r[np.arange(out_size), i1] += w1.astype(np.float32)
    return r


def upsample_bilinear_nchw(logits_nhwc, H, W):
    """(B, Hf, Wf, K) f32 -> (B, K, H, W) f32 via one fused two-matmul kernel."""
    B, Hf, Wf, Kc = logits_nhwc.shape
    BK = B * Kc
    x = jnp.transpose(logits_nhwc, (0, 3, 1, 2)).reshape(BK, Hf, Wf)
    x = x.astype(jnp.float32)

    n_h = max(1, -(-H // 256))                 # number of output-row tiles
    th = _round_up(-(-H // n_h), 8)
    Hp = th * n_h
    ry = np.zeros((Hp, Hf), np.float32)
    ry[:H] = _interp_rows(Hf, H)
    rxt = np.ascontiguousarray(_interp_rows(Wf, W).T)          # (Wf, W)

    flops = 2 * BK * Hp * Wf * Hf + 2 * BK * Hp * W * Wf
    bytes_accessed = x.size * 4 + ry.size * 4 + rxt.size * 4 + BK * Hp * W * 4

    out = pl.pallas_call(
        _upsample_kernel,
        out_shape=jax.ShapeDtypeStruct((BK, Hp, W), jnp.float32),
        grid=(BK, Hp // th),
        in_specs=[
            pl.BlockSpec((1, Hf, Wf), lambda bk, h: (bk, 0, 0)),  # per-(b,c) slab
            pl.BlockSpec((th, Hf), lambda bk, h: (h, 0)),         # row-interp tile
            pl.BlockSpec((Wf, W), lambda bk, h: (0, 0)),          # resident col interp
        ],
        out_specs=pl.BlockSpec((1, th, W), lambda bk, h: (bk, h, 0)),
        compiler_params=pltpu.CompilerParams(
            dimension_semantics=("parallel", "parallel"),
            vmem_limit_bytes=_vmem_limit_bytes()),
        cost_estimate=pl.CostEstimate(flops=flops, transcendentals=0,
                                      bytes_accessed=bytes_accessed),
    )(x, jnp.asarray(ry), jnp.asarray(rxt))
    return out[:, :H, :].reshape(B, Kc, H, W)


# -----------------------------------------------------------------------------
# DeepLabV3 forward
# -----------------------------------------------------------------------------
def deeplabv3_forward(x_nchw, params):
    B, Cin, H, W = x_nchw.shape
    x = jnp.transpose(x_nchw, (0, 2, 3, 1))                      # NCHW -> NHWC

    # backbone stage 1 (3x3 s2 conv + ReLU) fused with the aux head
    feat1, logits_aux = conv3x3s2_relu_head(
        x, params["w1"], params["b1"], params["wa"], params["ba"],
        with_feat=True)

    # backbone stage 2 fused with the main classifier head (stage-2 features
    # never leave VMEM; only the logits are written to HBM)
    logits_out = conv3x3s2_relu_head(
        feat1, params["w2"], params["b2"], params["wc"], params["bc"],
        with_feat=False)

    # bilinear upsample to input resolution (align_corners=False), kept in f32
    out = upsample_bilinear_nchw(logits_out, H, W)
    aux = upsample_bilinear_nchw(logits_aux, H, W)
    return {"out": out, "aux": aux}


def init_params(key, cin=4, c1=16, c2=32, num_classes=8):
    ks = jax.random.split(key, 8)
    s = 0.1
    return {
        "w1": jax.random.normal(ks[0], (3, 3, cin, c1), jnp.float32) * s,
        "b1": jax.random.normal(ks[1], (c1,), jnp.float32) * s,
        "w2": jax.random.normal(ks[2], (3, 3, c1, c2), jnp.float32) * s,
        "b2": jax.random.normal(ks[3], (c2,), jnp.float32) * s,
        "wc": jax.random.normal(ks[4], (c2, num_classes), jnp.float32) * s,
        "bc": jax.random.normal(ks[5], (num_classes,), jnp.float32) * s,
        "wa": jax.random.normal(ks[6], (c1, num_classes), jnp.float32) * s,
        "ba": jax.random.normal(ks[7], (num_classes,), jnp.float32) * s,
    }


def _reference_forward(x_nchw, params):
    """Pure-XLA reference (f32) for a loose parity check."""
    x = jnp.transpose(x_nchw, (0, 2, 3, 1))

    def conv(inp, w, b):
        y = jax.lax.conv_general_dilated(
            inp, w, window_strides=(2, 2), padding=((1, 1), (1, 1)),
            dimension_numbers=("NHWC", "HWIO", "NHWC"))
        return jax.nn.relu(y + b)

    f1 = conv(x, params["w1"], params["b1"])
    f2 = conv(f1, params["w2"], params["b2"])
    la = f1 @ params["wa"] + params["ba"]
    lo = f2 @ params["wc"] + params["bc"]
    B, H, W, _ = x.shape

    def up(l):
        l = jnp.transpose(l, (0, 3, 1, 2))
        return jax.image.resize(l, (l.shape[0], l.shape[1], H, W),
                                method="bilinear")

    return {"out": up(lo), "aux": up(la)}


if __name__ == "__main__":
    key = jax.random.PRNGKey(0)
    k_in, k_par = jax.random.split(key)

    B, C, H, W = 2, 4, 16, 16
    x = jax.random.normal(k_in, (B, C, H, W), jnp.float32)   # NCHW, like PyTorch
    params = init_params(k_par, cin=C)

    fwd = jax.jit(deeplabv3_forward)
    result = fwd(x, params)
    jax.block_until_ready(result)

    assert result["out"].shape == (B, 8, H, W), result["out"].shape
    assert result["aux"].shape == (B, 8, H, W), result["aux"].shape
    assert bool(jnp.all(jnp.isfinite(result["out"])))
    assert bool(jnp.all(jnp.isfinite(result["aux"])))

    # loose parity check vs. the f32 XLA reference (conv path uses bf16 MXU
    # inputs, expected deviation ~1e-2; threshold leaves a ~10x margin)
    ref = _reference_forward(x, params)
    assert float(jnp.max(jnp.abs(result["out"] - ref["out"]))) < 0.1
    assert float(jnp.max(jnp.abs(result["aux"] - ref["aux"]))) < 0.1

    print("KERNEL_OK")
</pallas_src>

<mosaic_0001>
module attributes {stable_mosaic.version = 11 : i64} {
  func.func @_conv_head_kernel(%arg0: i32, %arg1: memref<72x24xbf16, #tpu.memory_space<vmem>>, %arg2: memref<24x16xbf16, #tpu.memory_space<vmem>>, %arg3: memref<24x16xbf16, #tpu.memory_space<vmem>>, %arg4: memref<1x16xf32, #tpu.memory_space<vmem>>, %arg5: memref<16x8xbf16, #tpu.memory_space<vmem>>, %arg6: memref<1x8xf32, #tpu.memory_space<vmem>>, %arg7: memref<72x16xbf16, #tpu.memory_space<vmem>>, %arg8: memref<72x8xf32, #tpu.memory_space<vmem>>, %arg9: memref<80x16xf32, #tpu.memory_space<vmem>>) attributes {dimension_semantics = [#tpu.dimension_semantics<parallel>], iteration_bounds = array<i64: 2>, scalar_prefetch = 0 : i64, scratch_operands = 1 : i64, tpu.core_type = #tpu.core_type<tc>, window_params = [{transform_indices = @transform_0, window_bounds = array<i64: 72, 24>}, {pipeline_mode = #tpu.pipeline_mode<synchronous>, transform_indices = @transform_1, window_bounds = array<i64: 24, 16>}, {pipeline_mode = #tpu.pipeline_mode<synchronous>, transform_indices = @transform_2, window_bounds = array<i64: 24, 16>}, {pipeline_mode = #tpu.pipeline_mode<synchronous>, transform_indices = @transform_3, window_bounds = array<i64: 1, 16>}, {pipeline_mode = #tpu.pipeline_mode<synchronous>, transform_indices = @transform_4, window_bounds = array<i64: 16, 8>}, {pipeline_mode = #tpu.pipeline_mode<synchronous>, transform_indices = @transform_5, window_bounds = array<i64: 1, 8>}, {transform_indices = @transform_6, window_bounds = array<i64: 72, 16>}, {transform_indices = @transform_7, window_bounds = array<i64: 72, 8>}]} {
    %c0 = arith.constant 0 : index
    %c0_0 = arith.constant 0 : index
    %0 = vector.load %arg1[%c0, %c0_0] : memref<72x24xbf16, #tpu.memory_space<vmem>>, vector<72x24xbf16>
    %c0_1 = arith.constant 0 : index
    %c0_2 = arith.constant 0 : index
    %1 = vector.load %arg2[%c0_1, %c0_2] : memref<24x16xbf16, #tpu.memory_space<vmem>>, vector<24x16xbf16>
    %cst = arith.constant dense<0.000000e+00> : vector<72x16xf32>
    %2 = tpu.matmul %0, %1, %cst {dimension_numbers = #tpu.dot_dimension_numbers<[1], [0], [0], [1], [0, 0, 1, 1], [], []>} : vector<72x24xbf16>, vector<24x16xbf16>, vector<72x16xf32> -> vector<72x16xf32>
    %c0_3 = arith.constant 0 : index
    %c0_4 = arith.constant 0 : index
    %3 = vector.load %arg3[%c0_3, %c0_4] : memref<24x16xbf16, #tpu.memory_space<vmem>>, vector<24x16xbf16>
    %cst_5 = arith.constant dense<0.000000e+00> : vector<72x16xf32>
    %4 = tpu.matmul %0, %3, %cst_5 {dimension_numbers = #tpu.dot_dimension_numbers<[1], [0], [0], [1], [0, 0, 1, 1], [], []>} : vector<72x24xbf16>, vector<24x16xbf16>, vector<72x16xf32> -> vector<72x16xf32>
    %c0_6 = arith.constant 0 : index
    %c0_7 = arith.constant 0 : index
    %5 = vector.load %arg9[%c0_6, %c0_7] : memref<80x16xf32, #tpu.memory_space<vmem>>, vector<72x16xf32>
    tpu.vector_store %arg9[%c0_6, %c0_7], %4 {strides = array<i32>} : memref<80x16xf32, #tpu.memory_space<vmem>>, vector<72x16xf32>,
    %cst_8 = arith.constant 0.000000e+00 : f32
    %6 = vector.broadcast %cst_8 : f32 to vector<8x16xf32>
    %c72 = arith.constant 72 : index
    %c0_9 = arith.constant 0 : index
    %7 = vector.load %arg9[%c72, %c0_9] : memref<80x16xf32, #tpu.memory_space<vmem>>, vector<8x16xf32>
    tpu.vector_store %arg9[%c72, %c0_9], %6 {strides = array<i32>} : memref<80x16xf32, #tpu.memory_space<vmem>>, vector<8x16xf32>,
    %c1 = arith.constant 1 : index
    %c0_10 = arith.constant 0 : index
    %8 = vector.load %arg9[%c1, %c0_10] : memref<80x16xf32, #tpu.memory_space<vmem>>, vector<72x16xf32>
    %9 = arith.addf %2, %8 : vector<72x16xf32>
    %c0_11 = arith.constant 0 : index
    %c0_12 = arith.constant 0 : index
    %10 = vector.load %arg4[%c0_11, %c0_12] : memref<1x16xf32, #tpu.memory_space<vmem>>, vector<1x16xf32>
    %11 = vector.broadcast %10 : vector<1x16xf32> to vector<72x16xf32>
    %12 = arith.addf %9, %11 : vector<72x16xf32>
    %cst_13 = arith.constant 0.000000e+00 : f32
    %13 = vector.broadcast %cst_13 : f32 to vector<72x16xf32>
    %14 = arith.maximumf %12, %13 : vector<72x16xf32>
    %15 = arith.truncf %14 : vector<72x16xf32> to vector<72x16xbf16>
    %c0_14 = arith.constant 0 : index
    %c0_15 = arith.constant 0 : index
    %16 = vector.load %arg5[%c0_14, %c0_15] : memref<16x8xbf16, #tpu.memory_space<vmem>>, vector<16x8xbf16>
    %cst_16 = arith.constant dense<0.000000e+00> : vector<72x8xf32>
    %17 = tpu.matmul %15, %16, %cst_16 {dimension_numbers = #tpu.dot_dimension_numbers<[1], [0], [0], [1], [0, 0, 1, 1], [], []>} : vector<72x16xbf16>, vector<16x8xbf16>, vector<72x8xf32> -> vector<72x8xf32>
    %c0_17 = arith.constant 0 : index
    %c0_18 = arith.constant 0 : index
    %18 = vector.load %arg6[%c0_17, %c0_18] : memref<1x8xf32, #tpu.memory_space<vmem>>, vector<1x8xf32>
    %19 = vector.broadcast %18 : vector<1x8xf32> to vector<72x8xf32>
    %20 = arith.addf %17, %19 : vector<72x8xf32>
    %21 = arith.truncf %14 : vector<72x16xf32> to vector<72x16xbf16>
    %c0_19 = arith.constant 0 : index
    %c0_20 = arith.constant 0 : index
    %22 = vector.load %arg7[%c0_19, %c0_20] : memref<72x16xbf16, #tpu.memory_space<vmem>>, vector<72x16xbf16>
    tpu.vector_store %arg7[%c0_19, %c0_20], %21 {strides = array<i32>} : memref<72x16xbf16, #tpu.memory_space<vmem>>, vector<72x16xbf16>,
    %c0_21 = arith.constant 0 : index
    %c0_22 = arith.constant 0 : index
    %23 = vector.load %arg8[%c0_21, %c0_22] : memref<72x8xf32, #tpu.memory_space<vmem>>, vector<72x8xf32>
    tpu.vector_store %arg8[%c0_21, %c0_22], %20 {strides = array<i32>} : memref<72x8xf32, #tpu.memory_space<vmem>>, vector<72x8xf32>,
    return
  }
  func.func @transform_0(%arg0: i32) -> (i32, i32) {
    %c0_i32 = arith.constant 0 : i32
    %c0_i32_0 = arith.constant 0 : i32
    return %arg0, %c0_i32 : i32, i32
  }
  func.func @transform_1(%arg0: i32) -> (i32, i32) {
    %c0_i32 = arith.constant 0 : i32
    %c0_i32_0 = arith.constant 0 : i32
    %c0_i32_1 = arith.constant 0 : i32
    return %c0_i32, %c0_i32_0 : i32, i32
  }
  func.func @transform_2(%arg0: i32) -> (i32, i32) {
    %c0_i32 = arith.constant 0 : i32
    %c0_i32_0 = arith.constant 0 : i32
    %c0_i32_1 = arith.constant 0 : i32
    return %c0_i32, %c0_i32_0 : i32, i32
  }
  func.func @transform_3(%arg0: i32) -> (i32, i32) {
    %c0_i32 = arith.constant 0 : i32
    %c0_i32_0 = arith.constant 0 : i32
    %c0_i32_1 = arith.constant 0 : i32
    return %c0_i32, %c0_i32_0 : i32, i32
  }
  func.func @transform_4(%arg0: i32) -> (i32, i32) {
    %c0_i32 = arith.constant 0 : i32
    %c0_i32_0 = arith.constant 0 : i32
    %c0_i32_1 = arith.constant 0 : i32
    return %c0_i32, %c0_i32_0 : i32, i32
  }
  func.func @transform_5(%arg0: i32) -> (i32, i32) {
    %c0_i32 = arith.constant 0 : i32
    %c0_i32_0 = arith.constant 0 : i32
    %c0_i32_1 = arith.constant 0 : i32
    return %c0_i32, %c0_i32_0 : i32, i32
  }
  func.func @transform_6(%arg0: i32) -> (i32, i32) {
    %c0_i32 = arith.constant 0 : i32
    %c0_i32_0 = arith.constant 0 : i32
    return %arg0, %c0_i32 : i32, i32
  }
  func.func @transform_7(%arg0: i32) -> (i32, i32) {
    %c0_i32 = arith.constant 0 : i32
    %c0_i32_0 = arith.constant 0 : i32
    return %arg0, %c0_i32 : i32, i32
  }
}

module attributes {stable_mosaic.version = 11 : i64} {
  func.func @_conv_head_kernel(%arg0: i32, %arg1: memref<40x96xbf16, #tpu.memory_space<vmem>>, %arg2: memref<96x32xbf16, #tpu.memory_space<vmem>>, %arg3: memref<96x32xbf16, #tpu.memory_space<vmem>>, %arg4: memref<1x32xf32, #tpu.memory_space<vmem>>, %arg5: memref<32x8xbf16, #tpu.memory_space<vmem>>, %arg6: memref<1x8xf32, #tpu.memory_space<vmem>>, %arg7: memref<40x8xf32, #tpu.memory_space<vmem>>, %arg8: memref<48x32xf32, #tpu.memory_space<vmem>>) attributes {dimension_semantics = [#tpu.dimension_semantics<parallel>], iteration_bounds = array<i64: 1>, scalar_prefetch = 0 : i64, scratch_operands = 1 : i64, tpu.core_type = #tpu.core_type<tc>, window_params = [{transform_indices = @transform_0, window_bounds = array<i64: 40, 96>}, {pipeline_mode = #tpu.pipeline_mode<synchronous>, transform_indices = @transform_1, window_bounds = array<i64: 96, 32>}, {pipeline_mode = #tpu.pipeline_mode<synchronous>, transform_indices = @transform_2, window_bounds = array<i64: 96, 32>}, {pipeline_mode = #tpu.pipeline_mode<synchronous>, transform_indices = @transform_3, window_bounds = array<i64: 1, 32>}, {pipeline_mode = #tpu.pipeline_mode<synchronous>, transform_indices = @transform_4, window_bounds = array<i64: 32, 8>}, {pipeline_mode = #tpu.pipeline_mode<synchronous>, transform_indices = @transform_5, window_bounds = array<i64: 1, 8>}, {transform_indices = @transform_6, window_bounds = array<i64: 40, 8>}]} {
    %c0 = arith.constant 0 : index
    %c0_0 = arith.constant 0 : index
    %0 = vector.load %arg1[%c0, %c0_0] : memref<40x96xbf16, #tpu.memory_space<vmem>>, vector<40x96xbf16>
    %c0_1 = arith.constant 0 : index
    %c0_2 = arith.constant 0 : index
    %1 = vector.load %arg2[%c0_1, %c0_2] : memref<96x32xbf16, #tpu.memory_space<vmem>>, vector<96x32xbf16>
    %cst = arith.constant dense<0.000000e+00> : vector<40x32xf32>
    %2 = tpu.matmul %0, %1, %cst {dimension_numbers = #tpu.dot_dimension_numbers<[1], [0], [0], [1], [0, 0, 1, 1], [], []>} : vector<40x96xbf16>, vector<96x32xbf16>, vector<40x32xf32> -> vector<40x32xf32>
    %c0_3 = arith.constant 0 : index
    %c0_4 = arith.constant 0 : index
    %3 = vector.load %arg3[%c0_3, %c0_4] : memref<96x32xbf16, #tpu.memory_space<vmem>>, vector<96x32xbf16>
    %cst_5 = arith.constant dense<0.000000e+00> : vector<40x32xf32>
    %4 = tpu.matmul %0, %3, %cst_5 {dimension_numbers = #tpu.dot_dimension_numbers<[1], [0], [0], [1], [0, 0, 1, 1], [], []>} : vector<40x96xbf16>, vector<96x32xbf16>, vector<40x32xf32> -> vector<40x32xf32>
    %c0_6 = arith.constant 0 : index
    %c0_7 = arith.constant 0 : index
    %5 = vector.load %arg8[%c0_6, %c0_7] : memref<48x32xf32, #tpu.memory_space<vmem>>, vector<40x32xf32>
    tpu.vector_store %arg8[%c0_6, %c0_7], %4 {strides = array<i32>} : memref<48x32xf32, #tpu.memory_space<vmem>>, vector<40x32xf32>,
    %cst_8 = arith.constant 0.000000e+00 : f32
    %6 = vector.broadcast %cst_8 : f32 to vector<8x32xf32>
    %c40 = arith.constant 40 : index
    %c0_9 = arith.constant 0 : index
    %7 = vector.load %arg8[%c40, %c0_9] : memref<48x32xf32, #tpu.memory_space<vmem>>, vector<8x32xf32>
    tpu.vector_store %arg8[%c40, %c0_9], %6 {strides = array<i32>} : memref<48x32xf32, #tpu.memory_space<vmem>>, vector<8x32xf32>,
    %c1 = arith.constant 1 : index
    %c0_10 = arith.constant 0 : index
    %8 = vector.load %arg8[%c1, %c0_10] : memref<48x32xf32, #tpu.memory_space<vmem>>, vector<40x32xf32>
    %9 = arith.addf %2, %8 : vector<40x32xf32>
    %c0_11 = arith.constant 0 : index
    %c0_12 = arith.constant 0 : index
    %10 = vector.load %arg4[%c0_11, %c0_12] : memref<1x32xf32, #tpu.memory_space<vmem>>, vector<1x32xf32>
    %11 = vector.broadcast %10 : vector<1x32xf32> to vector<40x32xf32>
    %12 = arith.addf %9, %11 : vector<40x32xf32>
    %cst_13 = arith.constant 0.000000e+00 : f32
    %13 = vector.broadcast %cst_13 : f32 to vector<40x32xf32>
    %14 = arith.maximumf %12, %13 : vector<40x32xf32>
    %15 = arith.truncf %14 : vector<40x32xf32> to vector<40x32xbf16>
    %c0_14 = arith.constant 0 : index
    %c0_15 = arith.constant 0 : index
    %16 = vector.load %arg5[%c0_14, %c0_15] : memref<32x8xbf16, #tpu.memory_space<vmem>>, vector<32x8xbf16>
    %cst_16 = arith.constant dense<0.000000e+00> : vector<40x8xf32>
    %17 = tpu.matmul %15, %16, %cst_16 {dimension_numbers = #tpu.dot_dimension_numbers<[1], [0], [0], [1], [0, 0, 1, 1], [], []>} : vector<40x32xbf16>, vector<32x8xbf16>, vector<40x8xf32> -> vector<40x8xf32>
    %c0_17 = arith.constant 0 : index
    %c0_18 = arith.constant 0 : index
    %18 = vector.load %arg6[%c0_17, %c0_18] : memref<1x8xf32, #tpu.memory_space<vmem>>, vector<1x8xf32>
    %19 = vector.broadcast %18 : vector<1x8xf32> to vector<40x8xf32>
    %20 = arith.addf %17, %19 : vector<40x8xf32>
    %c0_19 = arith.constant 0 : index
    %c0_20 = arith.constant 0 : index
    %21 = vector.load %arg7[%c0_19, %c0_20] : memref<40x8xf32, #tpu.memory_space<vmem>>, vector<40x8xf32>
    tpu.vector_store %arg7[%c0_19, %c0_20], %20 {strides = array<i32>} : memref<40x8xf32, #tpu.memory_space<vmem>>, vector<40x8xf32>,
    return
  }
  func.func @transform_0(%arg0: i32) -> (i32, i32) {
    %c0_i32 = arith.constant 0 : i32
    %c0_i32_0 = arith.constant 0 : i32
    return %arg0, %c0_i32 : i32, i32
  }
  func.func @transform_1(%arg0: i32) -> (i32, i32) {
    %c0_i32 = arith.constant 0 : i32
    %c0_i32_0 = arith.constant 0 : i32
    %c0_i32_1 = arith.constant 0 : i32
    return %c0_i32, %c0_i32_0 : i32, i32
  }
  func.func @transform_2(%arg0: i32) -> (i32, i32) {
    %c0_i32 = arith.constant 0 : i32
    %c0_i32_0 = arith.constant 0 : i32
    %c0_i32_1 = arith.constant 0 : i32
    return %c0_i32, %c0_i32_0 : i32, i32
  }
  func.func @transform_3(%arg0: i32) -> (i32, i32) {
    %c0_i32 = arith.constant 0 : i32
    %c0_i32_0 = arith.constant 0 : i32
    %c0_i32_1 = arith.constant 0 : i32
    return %c0_i32, %c0_i32_0 : i32, i32
  }
  func.func @transform_4(%arg0: i32) -> (i32, i32) {
    %c0_i32 = arith.constant 0 : i32
    %c0_i32_0 = arith.constant 0 : i32
    %c0_i32_1 = arith.constant 0 : i32
    return %c0_i32, %c0_i32_0 : i32, i32
  }
  func.func @transform_5(%arg0: i32) -> (i32, i32) {
    %c0_i32 = arith.constant 0 : i32
    %c0_i32_0 = arith.constant 0 : i32
    %c0_i32_1 = arith.constant 0 : i32
    return %c0_i32, %c0_i32_0 : i32, i32
  }
  func.func @transform_6(%arg0: i32) -> (i32, i32) {
    %c0_i32 = arith.constant 0 : i32
    %c0_i32_0 = arith.constant 0 : i32
    return %arg0, %c0_i32 : i32, i32
  }
}

module attributes {stable_mosaic.version = 11 : i64} {
  func.func @_upsample_kernel(%arg0: i32, %arg1: i32, %arg2: memref<1x4x4xf32, #tpu.memory_space<vmem>>, %arg3: memref<16x4xf32, #tpu.memory_space<vmem>>, %arg4: memref<4x16xf32, #tpu.memory_space<vmem>>, %arg5: memref<1x16x16xf32, #tpu.memory_space<vmem>>) attributes {dimension_semantics = [#tpu.dimension_semantics<parallel>, #tpu.dimension_semantics<parallel>], iteration_bounds = array<i64: 16, 1>, scalar_prefetch = 0 : i64, scratch_operands = 0 : i64, tpu.core_type = #tpu.core_type<tc>, window_params = [{transform_indices = @transform_0, window_bounds = array<i64: 1, 4, 4>}, {transform_indices = @transform_1, window_bounds = array<i64: 16, 4>}, {pipeline_mode = #tpu.pipeline_mode<synchronous>, transform_indices = @transform_2, window_bounds = array<i64: 4, 16>}, {transform_indices = @transform_3, window_bounds = array<i64: 1, 16, 16>}]} {
    %c0 = arith.constant 0 : index
    %c0_0 = arith.constant 0 : index
    %0 = vector.load %arg3[%c0, %c0_0] : memref<16x4xf32, #tpu.memory_space<vmem>>, vector<16x4xf32>
    %c0_1 = arith.constant 0 : index
    %c0_2 = arith.constant 0 : index
    %c0_3 = arith.constant 0 : index
    %1 = vector.load %arg2[%c0_1, %c0_2, %c0_3] : memref<1x4x4xf32, #tpu.memory_space<vmem>>, vector<1x4x4xf32>
    %2 = vector.shape_cast %1 : vector<1x4x4xf32> to vector<4x4xf32>
    %cst = arith.constant dense<0.000000e+00> : vector<16x4xf32>
    %3 = tpu.matmul %0, %2, %cst {dimension_numbers = #tpu.dot_dimension_numbers<[1], [0], [0], [1], [0, 0, 1, 1], [], []>} : vector<16x4xf32>, vector<4x4xf32>, vector<16x4xf32> -> vector<16x4xf32>
    %c0_4 = arith.constant 0 : index
    %c0_5 = arith.constant 0 : index
    %4 = vector.load %arg4[%c0_4, %c0_5] : memref<4x16xf32, #tpu.memory_space<vmem>>, vector<4x16xf32>
    %cst_6 = arith.constant dense<0.000000e+00> : vector<16x16xf32>
    %5 = tpu.matmul %3, %4, %cst_6 {dimension_numbers = #tpu.dot_dimension_numbers<[1], [0], [0], [1], [0, 0, 1, 1], [], []>} : vector<16x4xf32>, vector<4x16xf32>, vector<16x16xf32> -> vector<16x16xf32>
    %c0_7 = arith.constant 0 : index
    %c0_8 = arith.constant 0 : index
    %c0_9 = arith.constant 0 : index
    %6 = vector.load %arg5[%c0_7, %c0_8, %c0_9] : memref<1x16x16xf32, #tpu.memory_space<vmem>>, vector<1x16x16xf32>
    %7 = vector.shape_cast %6 : vector<1x16x16xf32> to vector<16x16xf32>
    %8 = vector.shape_cast %5 : vector<16x16xf32> to vector<1x16x16xf32>
    tpu.vector_store %arg5[%c0_7, %c0_8, %c0_9], %8 {strides = array<i32>} : memref<1x16x16xf32, #tpu.memory_space<vmem>>, vector<1x16x16xf32>,
    return
  }
  func.func @transform_0(%arg0: i32, %arg1: i32) -> (i32, i32, i32) {
    %c0_i32 = arith.constant 0 : i32
    %c0_i32_0 = arith.constant 0 : i32
    %c0_i32_1 = arith.constant 0 : i32
    return %arg0, %c0_i32, %c0_i32_0 : i32, i32, i32
  }
  func.func @transform_1(%arg0: i32, %arg1: i32) -> (i32, i32) {
    %c0_i32 = arith.constant 0 : i32
    %c0_i32_0 = arith.constant 0 : i32
    return %arg1, %c0_i32 : i32, i32
  }
  func.func @transform_2(%arg0: i32, %arg1: i32) -> (i32, i32) {
    %c0_i32 = arith.constant 0 : i32
    %c0_i32_0 = arith.constant 0 : i32
    %c0_i32_1 = arith.constant 0 : i32
    return %c0_i32, %c0_i32_0 : i32, i32
  }
  func.func @transform_3(%arg0: i32, %arg1: i32) -> (i32, i32, i32) {
    %c0_i32 = arith.constant 0 : i32
    %c0_i32_0 = arith.constant 0 : i32
    return %arg0, %arg1, %c0_i32 : i32, i32, i32
  }
}

module attributes {stable_mosaic.version = 11 : i64} {
  func.func @_upsample_kernel(%arg0: i32, %arg1: i32, %arg2: memref<1x8x8xf32, #tpu.memory_space<vmem>>, %arg3: memref<16x8xf32, #tpu.memory_space<vmem>>, %arg4: memref<8x16xf32, #tpu.memory_space<vmem>>, %arg5: memref<1x16x16xf32, #tpu.memory_space<vmem>>) attributes {dimension_semantics = [#tpu.dimension_semantics<parallel>, #tpu.dimension_semantics<parallel>], iteration_bounds = array<i64: 16, 1>, scalar_prefetch = 0 : i64, scratch_operands = 0 : i64, tpu.core_type = #tpu.core_type<tc>, window_params = [{transform_indices = @transform_0, window_bounds = array<i64: 1, 8, 8>}, {transform_indices = @transform_1, window_bounds = array<i64: 16, 8>}, {pipeline_mode = #tpu.pipeline_mode<synchronous>, transform_indices = @transform_2, window_bounds = array<i64: 8, 16>}, {transform_indices = @transform_3, window_bounds = array<i64: 1, 16, 16>}]} {
    %c0 = arith.constant 0 : index
    %c0_0 = arith.constant 0 : index
    %0 = vector.load %arg3[%c0, %c0_0] : memref<16x8xf32, #tpu.memory_space<vmem>>, vector<16x8xf32>
    %c0_1 = arith.constant 0 : index
    %c0_2 = arith.constant 0 : index
    %c0_3 = arith.constant 0 : index
    %1 = vector.load %arg2[%c0_1, %c0_2, %c0_3] : memref<1x8x8xf32, #tpu.memory_space<vmem>>, vector<1x8x8xf32>
    %2 = vector.shape_cast %1 : vector<1x8x8xf32> to vector<8x8xf32>
    %cst = arith.constant dense<0.000000e+00> : vector<16x8xf32>
    %3 = tpu.matmul %0, %2, %cst {dimension_numbers = #tpu.dot_dimension_numbers<[1], [0], [0], [1], [0, 0, 1, 1], [], []>} : vector<16x8xf32>, vector<8x8xf32>, vector<16x8xf32> -> vector<16x8xf32>
    %c0_4 = arith.constant 0 : index
    %c0_5 = arith.constant 0 : index
    %4 = vector.load %arg4[%c0_4, %c0_5] : memref<8x16xf32, #tpu.memory_space<vmem>>, vector<8x16xf32>
    %cst_6 = arith.constant dense<0.000000e+00> : vector<16x16xf32>
    %5 = tpu.matmul %3, %4, %cst_6 {dimension_numbers = #tpu.dot_dimension_numbers<[1], [0], [0], [1], [0, 0, 1, 1], [], []>} : vector<16x8xf32>, vector<8x16xf32>, vector<16x16xf32> -> vector<16x16xf32>
    %c0_7 = arith.constant 0 : index
    %c0_8 = arith.constant 0 : index
    %c0_9 = arith.constant 0 : index
    %6 = vector.load %arg5[%c0_7, %c0_8, %c0_9] : memref<1x16x16xf32, #tpu.memory_space<vmem>>, vector<1x16x16xf32>
    %7 = vector.shape_cast %6 : vector<1x16x16xf32> to vector<16x16xf32>
    %8 = vector.shape_cast %5 : vector<16x16xf32> to vector<1x16x16xf32>
    tpu.vector_store %arg5[%c0_7, %c0_8, %c0_9], %8 {strides = array<i32>} : memref<1x16x16xf32, #tpu.memory_space<vmem>>, vector<1x16x16xf32>,
    return
  }
  func.func @transform_0(%arg0: i32, %arg1: i32) -> (i32, i32, i32) {
    %c0_i32 = arith.constant 0 : i32
    %c0_i32_0 = arith.constant 0 : i32
    %c0_i32_1 = arith.constant 0 : i32
    return %arg0, %c0_i32, %c0_i32_0 : i32, i32, i32
  }
  func.func @transform_1(%arg0: i32, %arg1: i32) -> (i32, i32) {
    %c0_i32 = arith.constant 0 : i32
    %c0_i32_0 = arith.constant 0 : i32
    return %arg1, %c0_i32 : i32, i32
  }
  func.func @transform_2(%arg0: i32, %arg1: i32) -> (i32, i32) {
    %c0_i32 = arith.constant 0 : i32
    %c0_i32_0 = arith.constant 0 : i32
    %c0_i32_1 = arith.constant 0 : i32
    return %c0_i32, %c0_i32_0 : i32, i32
  }
  func.func @transform_3(%arg0: i32, %arg1: i32) -> (i32, i32, i32) {
    %c0_i32 = arith.constant 0 : i32
    %c0_i32_0 = arith.constant 0 : i32
    return %arg0, %arg1, %c0_i32 : i32, i32, i32
  }
}

</mosaic_0001>

<llo_original>
// kernel: deeplabv3_forward.4
$region0: #{deeplabv3_forward.4}
  #allocation0 [shape = 'u32[]', space=smem, size = 0x4, offset = 0x4, fixed_abs, tag = 'smem constant byte address 0x4 - core index']
  #allocation1 [shape = 'u32[144,128]{1,0:T(1,128)}', space=vmem, size = 0x12000, scoped, tag = 'internal scratch']
  #allocation2 [shape = 'f32[80,16]{1,0:T(8,128)}', space=vmem, size = 0xa000, scoped, tag = 'scratch operand']
  %s0 = inlined_call_operand.vmem [shape: bf16[144,24], index: 0, kind: input, shape index: {}]
  %s1 = inlined_call_operand.vmem [shape: bf16[24,16], index: 1, kind: input, shape index: {}]
  %s2 = inlined_call_operand.vmem [shape: bf16[24,16], index: 2, kind: input, shape index: {}]
  %s3 = inlined_call_operand.vmem [shape: f32[1,16], index: 3, kind: input, shape index: {}]
  %s4 = inlined_call_operand.vmem [shape: bf16[16,8], index: 4, kind: input, shape index: {}]
  %s5 = inlined_call_operand.vmem [shape: f32[1,8], index: 5, kind: input, shape index: {}]
  %s6 = inlined_call_operand.vmem [shape: bf16[144,16], index: 6, kind: output, shape index: {0}]
  %s7 = inlined_call_operand.vmem [shape: f32[144,8], index: 7, kind: output, shape index: {1}]
  %8 = xla_tuple %s6, %s7
  %s9 = sld [smem:[#allocation0]]
  $region65: #{deeplabv3_forward.4} parent=0
    _
  %s11 = ssub.s32 1, %s9
  %s12 = scalar_select 0, %s11, %s9
  loop: start=0, step=1, limit=4
  $region2: #{deeplabv3_forward.4} parent=0 // loop_pre_header
    _
  $region3: #{deeplabv3_forward.4} parent=0 // loop_header
    %s14 = sphi 0, %s18
    %p15 = scmp.ge.s32.totalorder %s14, 4
    %s24 = sphi 0, %s26
    %s27 = sphi 0, %s24
    %s28 = sphi 0, %s27
    %s44 = sphi 0, %s28
    %s48 = sphi 0, %s48
    %s50 = sphi 0, %s48
    %s51 = sphi 0, %s50
    %s65 = sphi 0, %s51
    %s69 = sphi 0, %s69
    %s71 = sphi 0, %s69
    %s72 = sphi 0, %s71
    %s86 = sphi 0, %s72
    %s90 = sphi 0, %s90
    %s92 = sphi 0, %s90
    %s93 = sphi 0, %s92
    %s107 = sphi 0, %s93
    %s111 = sphi 0, %s111
    %s113 = sphi 0, %s111
    %s114 = sphi 0, %s113
    %s128 = sphi 0, %s114
    %s132 = sphi 0, %s132
    %s134 = sphi 0, %s132
    %s135 = sphi 0, %s134
    %s149 = sphi 0, %s135
    %s155 = sphi 0, %s157
    %s158 = sphi 0, %s155
    %s159 = sphi 0, %s158
    %s175 = sphi 0, %s159
    %s181 = sphi 0, %s183
    %s184 = sphi 0, %s181
    %s185 = sphi 0, %s184
    %s201 = sphi 0, %s185
  $region4: #{deeplabv3_forward.4} parent=0 // loop_header_branch
    %17 = sbr.rel (%p15) target = $region8
  $region5: #{deeplabv3_forward.4} parent=0 // loop_body
    %s19 = ssub.s32 %s14, 1
    %s20 = ssub.s32 %s14, 2
    %s21 = sadd.s32 %s14, 1
    %s22 = ssub.s32 %s14, %s21
    %p23 = scmp.eq.s32.totalorder %s22, 0
    %s25 = sadd.s32 %s24, 1
    %s26 = scalar_select %p23, %s24, %s25
    %p29 = pneg %p23
    %p30 = scmp.eq.s32.totalorder %s14, 1
    %p31 = por %p29, %p30
    %p32 = scmp.ne.s32.totalorder %s24, %s27
    %p33 = scmp.eq.s32.totalorder %s14, 0
    %p34 = por %p32, %p33
    %p35 = scmp.ne.s32.totalorder %s24, %s27
    %p36 = scmp.eq.s32.totalorder %s19, 1
    %p37 = por %p35, %p36
    %p38 = scmp.ne.s32.totalorder %s27, %s28
    %p39 = scmp.eq.s32.totalorder %s19, 0
    %p40 = por %p38, %p39
    %p41 = scmp.ne.s32.totalorder %s27, %s28
    %p42 = scmp.eq.s32.totalorder %s20, 1
    %p43 = por %p41, %p42
    %p45 = scmp.ne.s32.totalorder %s28, %s44
    %p46 = scmp.eq.s32.totalorder %s20, 0
    %p47 = por %p45, %p46
    %s49 = sadd.s32 %s48, 1
    %p52 = scmp.eq.s32.totalorder %s14, 1
    %p53 = scmp.ne.s32.totalorder %s48, %s50
    %p54 = scmp.eq.s32.totalorder %s14, 0
    %p55 = por %p53, %p54
    %p56 = scmp.ne.s32.totalorder %s48, %s50
    %p57 = scmp.eq.s32.totalorder %s19, 1
    %p58 = por %p56, %p57
    %p59 = scmp.ne.s32.totalorder %s50, %s51
    %p60 = scmp.eq.s32.totalorder %s19, 0
    %p61 = por %p59, %p60
    %p62 = scmp.ne.s32.totalorder %s50, %s51
    %p63 = scmp.eq.s32.totalorder %s20, 1
    %p64 = por %p62, %p63
    %p66 = scmp.ne.s32.totalorder %s51, %s65
    %p67 = scmp.eq.s32.totalorder %s20, 0
    %p68 = por %p66, %p67
    %s70 = sadd.s32 %s69, 1
    %p73 = scmp.eq.s32.totalorder %s14, 1
    %p74 = scmp.ne.s32.totalorder %s69, %s71
    %p75 = scmp.eq.s32.totalorder %s14, 0
    %p76 = por %p74, %p75
    %p77 = scmp.ne.s32.totalorder %s69, %s71
    %p78 = scmp.eq.s32.totalorder %s19, 1
    %p79 = por %p77, %p78
    %p80 = scmp.ne.s32.totalorder %s71, %s72
    %p81 = scmp.eq.s32.totalorder %s19, 0
    %p82 = por %p80, %p81
    %p83 = scmp.ne.s32.totalorder %s71, %s72
    %p84 = scmp.eq.s32.totalorder %s20, 1
    %p85 = por %p83, %p84
    %p87 = scmp.ne.s32.totalorder %s72, %s86
    %p88 = scmp.eq.s32.totalorder %s20, 0
    %p89 = por %p87, %p88
    %s91 = sadd.s32 %s90, 1
    %p94 = scmp.eq.s32.totalorder %s14, 1
    %p95 = scmp.ne.s32.totalorder %s90, %s92
    %p96 = scmp.eq.s32.totalorder %s14, 0
    %p97 = por %p95, %p96
    %p98 = scmp.ne.s32.totalorder %s90, %s92
    %p99 = scmp.eq.s32.totalorder %s19, 1
    %p100 = por %p98, %p99
    %p101 = scmp.ne.s32.totalorder %s92, %s93
    %p102 = scmp.eq.s32.totalorder %s19, 0
    %p103 = por %p101, %p102
    %p104 = scmp.ne.s32.totalorder %s92, %s93
    %p105 = scmp.eq.s32.totalorder %s20, 1
    %p106 = por %p104, %p105
    %p108 = scmp.ne.s32.totalorder %s93, %s107
    %p109 = scmp.eq.s32.totalorder %s20, 0
    %p110 = por %p108, %p109
    %s112 = sadd.s32 %s111, 1
    %p115 = scmp.eq.s32.totalorder %s14, 1
    %p116 = scmp.ne.s32.totalorder %s111, %s113
    %p117 = scmp.eq.s32.totalorder %s14, 0
    %p118 = por %p116, %p117
    %p119 = scmp.ne.s32.totalorder %s111, %s113
    %p120 = scmp.eq.s32.totalorder %s19, 1
    %p121 = por %p119, %p120
    %p122 = scmp.ne.s32.totalorder %s113, %s114
    %p123 = scmp.eq.s32.totalorder %s19, 0
    %p124 = por %p122, %p123
    %p125 = scmp.ne.s32.totalorder %s113, %s114
    %p126 = scmp.eq.s32.totalorder %s20, 1
    %p127 = por %p125, %p126
    %p129 = scmp.ne.s32.totalorder %s114, %s128
    %p130 = scmp.eq.s32.totalorder %s20, 0
    %p131 = por %p129, %p130
    %s133 = sadd.s32 %s132, 1
    %p136 = scmp.eq.s32.totalorder %s14, 1
    %p137 = scmp.ne.s32.totalorder %s132, %s134
    %p138 = scmp.eq.s32.totalorder %s14, 0
    %p139 = por %p137, %p138
    %p140 = scmp.ne.s32.totalorder %s132, %s134
    %p141 = scmp.eq.s32.totalorder %s19, 1
    %p142 = por %p140, %p141
    %p143 = scmp.ne.s32.totalorder %s134, %s135
    %p144 = scmp.eq.s32.totalorder %s19, 0
    %p145 = por %p143, %p144
    %p146 = scmp.ne.s32.totalorder %s134, %s135
    %p147 = scmp.eq.s32.totalorder %s20, 1
    %p148 = por %p146, %p147
    %p150 = scmp.ne.s32.totalorder %s135, %s149
    %p151 = scmp.eq.s32.totalorder %s20, 0
    %p152 = por %p150, %p151
    %s153 = ssub.s32 %s14, %s21
    %p154 = scmp.eq.s32.totalorder %s153, 0
    %s156 = sadd.s32 %s155, 1
    %s157 = scalar_select %p154, %s155, %s156
    %p160 = pneg %p154
    %p161 = scmp.eq.s32.totalorder %s14, 1
    %p162 = por %p160, %p161
    %p163 = scmp.ne.s32.totalorder %s155, %s158
    %p164 = scmp.eq.s32.totalorder %s14, 0
    %p165 = por %p163, %p164
    %p166 = scmp.ne.s32.totalorder %s155, %s158
    %p167 = scmp.eq.s32.totalorder %s19, 1
    %p168 = por %p166, %p167
    %p169 = scmp.ne.s32.totalorder %s158, %s159
    %p170 = scmp.eq.s32.totalorder %s19, 0
    %p171 = por %p169, %p170
    %p172 = scmp.ne.s32.totalorder %s158, %s159
    %p173 = scmp.eq.s32.totalorder %s20, 1
    %p174 = por %p172, %p173
    %p176 = scmp.ne.s32.totalorder %s159, %s175
    %p177 = scmp.eq.s32.totalorder %s20, 0
    %p178 = por %p176, %p177
    %s179 = ssub.s32 %s14, %s21
    %p180 = scmp.eq.s32.totalorder %s179, 0
    %s182 = sadd.s32 %s181, 1
    %s183 = scalar_select %p180, %s181, %s182
    %p186 = pneg %p180
    %p187 = scmp.eq.s32.totalorder %s14, 1
    %p188 = por %p186, %p187
    %p189 = scmp.ne.s32.totalorder %s181, %s184
    %p190 = scmp.eq.s32.totalorder %s14, 0
    %p191 = por %p189, %p190
    %p192 = scmp.ne.s32.totalorder %s181, %s184
    %p193 = scmp.eq.s32.totalorder %s19, 1
    %p194 = por %p192, %p193
    %p195 = scmp.ne.s32.totalorder %s184, %s185
    %p196 = scmp.eq.s32.totalorder %s19, 0
    %p197 = por %p195, %p196
    %p198 = scmp.ne.s32.totalorder %s184, %s185
    %p199 = scmp.eq.s32.totalorder %s20, 1
    %p200 = por %p198, %p199
    %p202 = scmp.ne.s32.totalorder %s185, %s201
    %p203 = scmp.eq.s32.totalorder %s20, 0
    %p204 = por %p202, %p203
    %p205 = scmp.le.s32.totalorder 1, %s14
    %p206 = scmp.lt.s32.totalorder %s14, 3
    %p207 = pnand %p205, %p206
    %p208 = pneg %p207
    // Predicated region
    $region9: #{deeplabv3_forward.4} parent=5 // pred_check
      _
    $region10: #{deeplabv3_forward.4} parent=5 // pred_check_branch
      %210 = sbr.rel (%p207) target = $region12
    $region11: #{deeplabv3_forward.4} parent=5 // pred_region
      %s211 = ssub.s32 %s14, 1
      // Predicated region
      $region13: #{deeplabv3_forward.4} parent=11 // pred_check
        %p212 = pneg %p61
      $region14: #{deeplabv3_forward.4} parent=11 // pred_check_branch
        %214 = sbr.rel (%p212) target = $region16
      $region15: #{deeplabv3_forward.4} parent=11 // pred_region
        _
      $region16: #{deeplabv3_forward.4} parent=11 // pred_fallthru
        _
      // Predicated region
      $region17: #{deeplabv3_forward.4} parent=11 // pred_check
        %p215 = pneg %p82
      $region18: #{deeplabv3_forward.4} parent=11 // pred_check_branch
        %217 = sbr.rel (%p215) target = $region20
      $region19: #{deeplabv3_forward.4} parent=11 // pred_region
        _
      $region20: #{deeplabv3_forward.4} parent=11 // pred_fallthru
        _
      // Predicated region
      $region21: #{deeplabv3_forward.4} parent=11 // pred_check
        %p218 = pneg %p103
      $region22: #{deeplabv3_forward.4} parent=11 // pred_check_branch
        %220 = sbr.rel (%p218) target = $region24
      $region23: #{deeplabv3_forward.4} parent=11 // pred_region
        _
      $region24: #{deeplabv3_forward.4} parent=11 // pred_fallthru
        _
      // Predicated region
      $region25: #{deeplabv3_forward.4} parent=11 // pred_check
        %p221 = pneg %p124
      $region26: #{deeplabv3_forward.4} parent=11 // pred_check_branch
        %223 = sbr.rel (%p221) target = $region28
      $region27: #{deeplabv3_forward.4} parent=11 // pred_region
        _
      $region28: #{deeplabv3_forward.4} parent=11 // pred_fallthru
        _
      // Predicated region
      $region29: #{deeplabv3_forward.4} parent=11 // pred_check
        %p224 = pneg %p145
      $region30: #{deeplabv3_forward.4} parent=11 // pred_check_branch
        %226 = sbr.rel (%p224) target = $region32
      $region31: #{deeplabv3_forward.4} parent=11 // pred_region
        _
      $region32: #{deeplabv3_forward.4} parent=11 // pred_fallthru
        _
    $region12: #{deeplabv3_forward.4} parent=5 // pred_fallthru
      _
    %p227 = scmp.lt.s32.totalorder %s14, 2
    // Predicated region
    $region33: #{deeplabv3_forward.4} parent=5 // pred_check
      %p228 = pneg %p227
    $region34: #{deeplabv3_forward.4} parent=5 // pred_check_branch
      %230 = sbr.rel (%p228) target = $region36
    $region35: #{deeplabv3_forward.4} parent=5 // pred_region
      // Predicated region
      $region37: #{deeplabv3_forward.4} parent=35 // pred_check
        %p231 = pneg %p34
      $region38: #{deeplabv3_forward.4} parent=35 // pred_check_branch
        %233 = sbr.rel (%p231) target = $region40
      $region39: #{deeplabv3_forward.4} parent=35 // pred_region
        %s234 = smul.u32 9, %s14
        %p235 = scmp.lt.s32.totalorder %s234, 17
        %s236 = scalar_select %p235, %s234, 17
        %s237 = smul.addr %s236, 4
        %s238 = scalar_lea.vmem %s0, %s237
        %s239 = smul.u32 9, %s14
      $region40: #{deeplabv3_forward.4} parent=35 // pred_fallthru
        _
    $region36: #{deeplabv3_forward.4} parent=5 // pred_fallthru
      _
    %p240 = scmp.le.s32.totalorder 1, %s14
    %p241 = scmp.lt.s32.totalorder %s14, 3
    %p242 = pnand %p240, %p241
    %p243 = pneg %p242
    // Predicated region
    $region41: #{deeplabv3_forward.4} parent=5 // pred_check
      _
    $region42: #{deeplabv3_forward.4} parent=5 // pred_check_branch
      %245 = sbr.rel (%p242) target = $region44
    $region43: #{deeplabv3_forward.4} parent=5 // pred_region
      %s246 = ssub.s32 %s14, 1
      %s247 = smul.u32 9, %s19
      %p248 = scmp.lt.s32.totalorder %s247, 17
      %s249 = scalar_select %p248, %s247, 17
      %s250 = smul.addr %s249, 4
      %s251 = scalar_lea.vmem %s0, %s250
      %p252 = pneg %p40
      %p253 = pneg %p37
      %p254 = pneg %p61
      %p255 = pneg %p58
      %p256 = pneg %p82
      %p257 = pneg %p79
      %p258 = pneg %p103
      %p259 = pneg %p100
      %p260 = pneg %p124
      %p261 = pneg %p121
      %p262 = pneg %p145
      %p263 = pneg %p142
      %p264 = pneg %p171
      %p265 = pneg %p168
      %s266 = smul.u32 9, %s19
      %p267 = scmp.lt.s32.totalorder %s266, 17
      %s268 = scalar_select %p267, %s266, 17
      %s269 = smul.addr %s268, 4
      %s270 = scalar_lea.vmem %s6, %s269
      %p271 = pneg %p197
      %p272 = pneg %p194
      %s273 = smul.u32 9, %s19
      %p274 = scmp.lt.s32.totalorder %s273, 17
      %s275 = scalar_select %p274, %s273, 17
      %s276 = smul.addr %s275, 8
      %s277 = scalar_lea.vmem %s7, %s276
      %s278 = smul.u32 9, %s19
      %p279 = scmp.lt.s32.totalorder %s278, 17
      %s280 = scalar_select %p279, %s278, 17
      %s281 = smul.addr %s280, 4
      %s282 = scalar_lea.vmem %s0, %s281
      %s283 = smul.u32 9, %s19
      %s284 = smul.u32 9, %s19
      %p285 = scmp.lt.s32.totalorder %s284, 17
      %s286 = scalar_select %p285, %s284, 17
      %s287 = smul.addr %s286, 4
      %s288 = scalar_lea.vmem %s6, %s287
      %s289 = smul.u32 9, %s19
      %s290 = smul.u32 9, %s19
      %p291 = scmp.lt.s32.totalorder %s290, 17
      %s292 = scalar_select %p291, %s290, 17
      %s293 = smul.addr %s292, 8
      %s294 = scalar_lea.vmem %s7, %s293
      %s295 = smul.u32 9, %s19
      %v297 = vld [vmem:[%s282] sm:$0xf]
      %v298 = vld [vmem:[%s282 + $0x4] sm:$0xf]
      %v299 = vld [vmem:[%s282 + $0x8] sm:$0xf]
      %v300 = vld [vmem:[%s282 + $0xc] sm:$0xf]
      %v301 = vld [vmem:[%s282 + $0x10] sm:$0xf]
      %v302 = vld [vmem:[%s282 + $0x14] sm:$0xf]
      %v303 = vld [vmem:[%s282 + $0x18] sm:$0xf]
      %v304 = vld [vmem:[%s282 + $0x1c] sm:$0xf]
      %v305 = vld [vmem:[%s282 + $0x20] sm:$0xf]
      %v306 = vld [vmem:[%s1] sm:$0xf]
      %v307 = vld [vmem:[%s1 + $0x4] sm:$0xf]
      %v308 = vld [vmem:[%s1 + $0x8] sm:$0xf]
      %v309 = vld [vmem:[%s2] sm:$0xf]
      %v310 = vld [vmem:[%s2 + $0x4] sm:$0xf]
      %v311 = vld [vmem:[%s2 + $0x8] sm:$0xf]
      %v321 = vunpack.c.l.b16 %v297
      %v322 = vunpack.c.l.b16 %v298
      %v323 = vunpack.c.l.b16 %v299
      %v324 = vunpack.c.l.b16 %v300
      %v325 = vunpack.c.l.b16 %v301
      %v326 = vunpack.c.l.b16 %v302
      %v327 = vunpack.c.l.b16 %v303
      %v328 = vunpack.c.l.b16 %v304
      %v329 = vunpack.c.l.b16 %v305
      %v330 = vpack.c.b16 %v322, %v321
      %v331 = vpack.c.b16 %v324, %v323
      %v332 = vpack.c.b16 %v326, %v325
      %v333 = vpack.c.b16 %v328, %v327
      %v334 = vpack.c.b16 %v329, %v329
      %v338 = vunpack.c.l.b16 %v309
      %v339 = vunpack.c.l.b16 %v310
      %v340 = vunpack.c.l.b16 %v311
      %v341 = vpack.c.b16 %v339, %v338
      %v342 = vpack.c.b16 %v340, %v340
      %vm344 = vcmask 195584
      %v346 = vsel %vm344, %v330, 0
      %v349 = vsel %vm344, %v331, 0
      %v352 = vsel %vm344, %v332, 0
      %v355 = vsel %vm344, %v333, 0
      %v358 = vsel %vm344, %v334, 0
      %vm360 = vcmask 1043456
      %v362 = vsel %vm360, %v342, 0
      %364 = vmatprep.subr.bf16.mxu0 0
      %365 = vmatpush1.bf16.msra.mxu0 %v341
      %366 = vmatprep.subr.bf16.mxu0 0
      %367 = vmatpush1.bf16.msra.mxu0 %v362
      %368 = vmatprep.subr.bf16.mxu0 0
      %369 = vmatpush1.bf16.msra.mxu0 0
      %370 = vmatprep.subr.bf16.mxu0 0
      %371 = vmatpush1.bf16.msra.mxu0 0
      %372 = vmatprep.subr.bf16.mxu0 0
      %373 = vmatpush1.bf16.msra.mxu0 0
      %374 = vmatprep.subr.bf16.mxu0 0
      %375 = vmatpush1.bf16.msra.mxu0 0
      %376 = vmatprep.subr.bf16.mxu0 0
      %377 = vmatpush1.bf16.msra.mxu0 0
      %378 = vmatprep.subr.bf16.mxu0 0
      %379 = vmatpush1.bf16.msra.mxu0 0
      %380 = vmatprep.subr.bf16.mxu0 0
      %381 = vmatpush1.bf16.msra.mxu0 0
      %382 = vmatprep.subr.bf16.mxu0 0
      %383 = vmatpush1.bf16.msra.mxu0 0
      %384 = vmatprep.subr.bf16.mxu0 0
      %385 = vmatpush1.bf16.msra.mxu0 0
      %386 = vmatprep.subr.bf16.mxu0 0
      %387 = vmatpush1.bf16.msra.mxu0 0
      %388 = vmatprep.subr.bf16.mxu0 0
      %389 = vmatpush1.bf16.msra.mxu0 0
      %390 = vmatprep.subr.bf16.mxu0 0
      %391 = vmatpush1.bf16.msra.mxu0 0
      %392 = vmatprep.subr.bf16.mxu0 0
      %393 = vmatpush1.bf16.msra.mxu0 0
      %394 = vmatprep.subr.bf16.mxu0 0
      %395 = vmatpush1.bf16.msra.mxu0 0
      %396 = vmatprep.mubr.bf16.mxu0 0
      %397 = vmatmul.mubr.bf16.gmra.mrb[0].mxu0 %v346
      %v398 = vpop.f32.mrb[0].mxu0
      %v399 = vadd.f32 0.0, %v398
      %v400 = vpop.f32.mrb[0].mxu0
      %v401 = vpop.f32.mrb[0].mxu0
      %v402 = vadd.f32 0.0, %v401
      %v403 = vpop.f32.mrb[0].mxu0
      %404 = vmatprep.mubr.bf16.mxu0 0
      %405 = vmatmul.mubr.bf16.gmra.mrb[0].mxu0 %v349
      %v406 = vpop.f32.mrb[0].mxu0
      %v407 = vadd.f32 0.0, %v406
      %v408 = vpop.f32.mrb[0].mxu0
      %v409 = vpop.f32.mrb[0].mxu0
      %v410 = vadd.f32 0.0, %v409
      %v411 = vpop.f32.mrb[0].mxu0
      %412 = vmatprep.mubr.bf16.mxu0 0
      %413 = vmatmul.mubr.bf16.gmra.mrb[0].mxu0 %v352
      %v414 = vpop.f32.mrb[0].mxu0
      %v415 = vadd.f32 0.0, %v414
      %v416 = vpop.f32.mrb[0].mxu0
      %v417 = vpop.f32.mrb[0].mxu0
      %v418 = vadd.f32 0.0, %v417
      %v419 = vpop.f32.mrb[0].mxu0
      %420 = vmatprep.mubr.bf16.mxu0 0
      %421 = vmatmul.mubr.bf16.gmra.mrb[0].mxu0 %v355
      %v422 = vpop.f32.mrb[0].mxu0
      %v423 = vadd.f32 0.0, %v422
      %v424 = vpop.f32.mrb[0].mxu0
      %v425 = vpop.f32.mrb[0].mxu0
      %v426 = vadd.f32 0.0, %v425
      %v427 = vpop.f32.mrb[0].mxu0
      %428 = vmatprep.mubr.bf16.mxu0 0
      %429 = vmatmul.mubr.bf16.gmra.mrb[0].mxu0 %v358
      %v430 = vpop.f32.mrb[0].mxu0
      %v431 = vadd.f32 0.0, %v430
      %v432 = vpop.f32.mrb[0].mxu0
      %v433 = vpop.f32.mrb[0].mxu0
      %v434 = vpop.f32.mrb[0].mxu0
      %435 = vdwg.mxu0
      %vm436 = vcmask 130048
      %437 = vst.msk [vmem:[#allocation2] sm:$0xff] %vm436, %v399
      %438 = vst.msk [vmem:[#allocation2 + $0x8] sm:$0xff] %vm436, %v402
      %439 = vst.msk [vmem:[#allocation2 + $0x10] sm:$0xff] %vm436, %v407
      %440 = vst.msk [vmem:[#allocation2 + $0x18] sm:$0xff] %vm436, %v410
      %441 = vst.msk [vmem:[#allocation2 + $0x20] sm:$0xff] %vm436, %v415
      %442 = vst.msk [vmem:[#allocation2 + $0x28] sm:$0xff] %vm436, %v418
      %443 = vst.msk [vmem:[#allocation2 + $0x30] sm:$0xff] %vm436, %v423
      %444 = vst.msk [vmem:[#allocation2 + $0x38] sm:$0xff] %vm436, %v426
      %445 = vst.msk [vmem:[#allocation2 + $0x40] sm:$0xff] %vm436, %v431
      %446 = vst.msk [vmem:[#allocation2 + $0x48] sm:$0xff] %vm436, 0.0
      %v447 = vld [vmem:[#allocation2 + $0x1] sm:$0xff]
      %v448 = vld [vmem:[#allocation2 + $0x9] sm:$0xff]
      %v449 = vld [vmem:[#allocation2 + $0x11] sm:$0xff]
      %v450 = vld [vmem:[#allocation2 + $0x19] sm:$0xff]
      %v451 = vld [vmem:[#allocation2 + $0x21] sm:$0xff]
      %v452 = vld [vmem:[#allocation2 + $0x29] sm:$0xff]
      %v453 = vld [vmem:[#allocation2 + $0x31] sm:$0xff]
      %v454 = vld [vmem:[#allocation2 + $0x39] sm:$0xff]
      %v455 = vld [vmem:[#allocation2 + $0x41] sm:$0xff]
      %v459 = vunpack.c.l.b16 %v306
      %v460 = vunpack.c.l.b16 %v307
      %v461 = vunpack.c.l.b16 %v308
      %v462 = vpack.c.b16 %v460, %v459
      %v463 = vpack.c.b16 %v461, %v461
      %v466 = vsel %vm360, %v463, 0
      %468 = vmatprep.subr.bf16.mxu0 0
      %469 = vmatpush1.bf16.msra.mxu0 %v462
      %470 = vmatprep.subr.bf16.mxu0 0
      %471 = vmatpush1.bf16.msra.mxu0 %v466
      %472 = vmatprep.subr.bf16.mxu0 0
      %473 = vmatpush1.bf16.msra.mxu0 0
      %474 = vmatprep.subr.bf16.mxu0 0
      %475 = vmatpush1.bf16.msra.mxu0 0
      %476 = vmatprep.subr.bf16.mxu0 0
      %477 = vmatpush1.bf16.msra.mxu0 0
      %478 = vmatprep.subr.bf16.mxu0 0
      %479 = vmatpush1.bf16.msra.mxu0 0
      %480 = vmatprep.subr.bf16.mxu0 0
      %481 = vmatpush1.bf16.msra.mxu0 0
      %482 = vmatprep.subr.bf16.mxu0 0
      %483 = vmatpush1.bf16.msra.mxu0 0
      %484 = vmatprep.subr.bf16.mxu0 0
      %485 = vmatpush1.bf16.msra.mxu0 0
      %486 = vmatprep.subr.bf16.mxu0 0
      %487 = vmatpush1.bf16.msra.mxu0 0
      %488 = vmatprep.subr.bf16.mxu0 0
      %489 = vmatpush1.bf16.msra.mxu0 0
      %490 = vmatprep.subr.bf16.mxu0 0
      %491 = vmatpush1.bf16.msra.mxu0 0
      %492 = vmatprep.subr.bf16.mxu0 0
      %493 = vmatpush1.bf16.msra.mxu0 0
      %494 = vmatprep.subr.bf16.mxu0 0
      %495 = vmatpush1.bf16.msra.mxu0 0
      %496 = vmatprep.subr.bf16.mxu0 0
      %497 = vmatpush1.bf16.msra.mxu0 0
      %498 = vmatprep.subr.bf16.mxu0 0
      %499 = vmatpush1.bf16.msra.mxu0 0
      %500 = vmatprep.mubr.bf16.mxu0 0
      %501 = vmatmul.mubr.bf16.gmra.mrb[0].mxu0 %v346
      %v502 = vpop.f32.mrb[0].mxu0
      %v503 = vadd.f32 %v447, %v502
      %v504 = vpop.f32.mrb[0].mxu0
      %v505 = vpop.f32.mrb[0].mxu0
      %v506 = vadd.f32 %v448, %v505
      %v507 = vpop.f32.mrb[0].mxu0
      %508 = vmatprep.mubr.bf16.mxu0 0
      %509 = vmatmul.mubr.bf16.gmra.mrb[0].mxu0 %v349
      %v510 = vpop.f32.mrb[0].mxu0
      %v511 = vadd.f32 %v449, %v510
      %v512 = vpop.f32.mrb[0].mxu0
      %v513 = vpop.f32.mrb[0].mxu0
      %v514 = vadd.f32 %v450, %v513
      %v515 = vpop.f32.mrb[0].mxu0
      %516 = vmatprep.mubr.bf16.mxu0 0
      %517 = vmatmul.mubr.bf16.gmra.mrb[0].mxu0 %v352
      %v518 = vpop.f32.mrb[0].mxu0
      %v519 = vadd.f32 %v451, %v518
      %v520 = vpop.f32.mrb[0].mxu0
      %v521 = vpop.f32.mrb[0].mxu0
      %v522 = vadd.f32 %v452, %v521
      %v523 = vpop.f32.mrb[0].mxu0
      %524 = vmatprep.mubr.bf16.mxu0 0
      %525 = vmatmul.mubr.bf16.gmra.mrb[0].mxu0 %v355
      %v526 = vpop.f32.mrb[0].mxu0
      %v527 = vadd.f32 %v453, %v526
      %v528 = vpop.f32.mrb[0].mxu0
      %v529 = vpop.f32.mrb[0].mxu0
      %v530 = vadd.f32 %v454, %v529
      %v531 = vpop.f32.mrb[0].mxu0
      %532 = vmatprep.mubr.bf16.mxu0 0
      %533 = vmatmul.mubr.bf16.gmra.mrb[0].mxu0 %v358
      %v534 = vpop.f32.mrb[0].mxu0
      %v535 = vadd.f32 %v455, %v534
      %v536 = vpop.f32.mrb[0].mxu0
      %v537 = vpop.f32.mrb[0].mxu0
      %v538 = vpop.f32.mrb[0].mxu0
      %539 = vdwg.mxu0
      %v540 = vld [vmem:[%s3] sm:$0x1]
      %v542 = vlaneseq
      %v543 = vshrl.u32 %v542, 7
      %v544 = vsub.s32 0, %v543
      %v545 = vrot.slane %v540, %v544
      %v547 = vadd.f32 %v503, %v545
      %v548 = vadd.f32 %v506, %v545
      %v549 = vadd.f32 %v511, %v545
      %v550 = vadd.f32 %v514, %v545
      %v551 = vadd.f32 %v519, %v545
      %v552 = vadd.f32 %v522, %v545
      %v553 = vadd.f32 %v527, %v545
      %v554 = vadd.f32 %v530, %v545
      %v555 = vadd.f32 %v535, %v545
      %v556 = vmax.f32 %v547, 0.0
      %v557 = vmax.f32 %v548, 0.0
      %v558 = vmax.f32 %v549, 0.0
      %v559 = vmax.f32 %v550, 0.0
      %v560 = vmax.f32 %v551, 0.0
      %v561 = vmax.f32 %v552, 0.0
      %v562 = vmax.f32 %v553, 0.0
      %v563 = vmax.f32 %v554, 0.0
      %v564 = vmax.f32 %v555, 0.0
      %v565 = vpack.c.bf16 %v557, %v556
      %v566 = vpack.c.bf16 %v559, %v558
      %v567 = vpack.c.bf16 %v561, %v560
      %v568 = vpack.c.bf16 %v563, %v562
      %v569 = vpack.c.bf16 %v564, %v564
      %v570 = vld [vmem:[%s4] sm:$0xf]
      %v571 = vld [vmem:[%s4 + $0x4] sm:$0xf]
      %v572 = vld [vmem:[%s5] sm:$0x1]
      %v574 = vlaneseq
      %v575 = vshrl.u32 %v574, 7
      %v576 = vsub.s32 0, %v575
      %v577 = vrot.slane %v572, %v576
      %v581 = vunpack.c.l.b16 %v570
      %v582 = vunpack.c.l.b16 %v571
      %v583 = vpack.c.b16 %v582, %v581
      %v586 = vsel %vm436, %v565, 0
      %v589 = vsel %vm436, %v566, 0
      %v592 = vsel %vm436, %v567, 0
      %v595 = vsel %vm436, %v568, 0
      %v598 = vsel %vm436, %v569, 0
      %600 = vmatprep.subr.bf16.mxu0 0
      %601 = vmatpush1.bf16.msra.mxu0 %v583
      %602 = vmatprep.subr.bf16.mxu0 0
      %603 = vmatpush1.bf16.msra.mxu0 0
      %604 = vmatprep.subr.bf16.mxu0 0
      %605 = vmatpush1.bf16.msra.mxu0 0
      %606 = vmatprep.subr.bf16.mxu0 0
      %607 = vmatpush1.bf16.msra.mxu0 0
      %608 = vmatprep.subr.bf16.mxu0 0
      %609 = vmatpush1.bf16.msra.mxu0 0
      %610 = vmatprep.subr.bf16.mxu0 0
      %611 = vmatpush1.bf16.msra.mxu0 0
      %612 = vmatprep.subr.bf16.mxu0 0
      %613 = vmatpush1.bf16.msra.mxu0 0
      %614 = vmatprep.subr.bf16.mxu0 0
      %615 = vmatpush1.bf16.msra.mxu0 0
      %616 = vmatprep.subr.bf16.mxu0 0
      %617 = vmatpush1.bf16.msra.mxu0 0
      %618 = vmatprep.subr.bf16.mxu0 0
      %619 = vmatpush1.bf16.msra.mxu0 0
      %620 = vmatprep.subr.bf16.mxu0 0
      %621 = vmatpush1.bf16.msra.mxu0 0
      %622 = vmatprep.subr.bf16.mxu0 0
      %623 = vmatpush1.bf16.msra.mxu0 0
      %624 = vmatprep.subr.bf16.mxu0 0
      %625 = vmatpush1.bf16.msra.mxu0 0
      %626 = vmatprep.subr.bf16.mxu0 0
      %627 = vmatpush1.bf16.msra.mxu0 0
      %628 = vmatprep.subr.bf16.mxu0 0
      %629 = vmatpush1.bf16.msra.mxu0 0
      %630 = vmatprep.subr.bf16.mxu0 0
      %631 = vmatpush1.bf16.msra.mxu0 0
      %632 = vmatprep.mubr.bf16.mxu0 0
      %633 = vmatmul.mubr.bf16.gmra.mrb[0].mxu0 %v586
      %v634 = vpop.f32.mrb[0].mxu0
      %v635 = vadd.f32 %v577, %v634
      %v636 = vpop.f32.mrb[0].mxu0
      %v637 = vpop.f32.mrb[0].mxu0
      %v638 = vadd.f32 %v577, %v637
      %v639 = vpop.f32.mrb[0].mxu0
      %640 = vmatprep.mubr.bf16.mxu0 0
      %641 = vmatmul.mubr.bf16.gmra.mrb[0].mxu0 %v589
      %v642 = vpop.f32.mrb[0].mxu0
      %v643 = vadd.f32 %v577, %v642
      %v644 = vpop.f32.mrb[0].mxu0
      %v645 = vpop.f32.mrb[0].mxu0
      %v646 = vadd.f32 %v577, %v645
      %v647 = vpop.f32.mrb[0].mxu0
      %648 = vmatprep.mubr.bf16.mxu0 0
      %649 = vmatmul.mubr.bf16.gmra.mrb[0].mxu0 %v592
      %v650 = vpop.f32.mrb[0].mxu0
      %v651 = vadd.f32 %v577, %v650
      %v652 = vpop.f32.mrb[0].mxu0
      %v653 = vpop.f32.mrb[0].mxu0
      %v654 = vadd.f32 %v577, %v653
      %v655 = vpop.f32.mrb[0].mxu0
      %656 = vmatprep.mubr.bf16.mxu0 0
      %657 = vmatmul.mubr.bf16.gmra.mrb[0].mxu0 %v595
      %v658 = vpop.f32.mrb[0].mxu0
      %v659 = vadd.f32 %v577, %v658
      %v660 = vpop.f32.mrb[0].mxu0
      %v661 = vpop.f32.mrb[0].mxu0
      %v662 = vadd.f32 %v577, %v661
      %v663 = vpop.f32.mrb[0].mxu0
      %664 = vmatprep.mubr.bf16.mxu0 0
      %665 = vmatmul.mubr.bf16.gmra.mrb[0].mxu0 %v598
      %v666 = vpop.f32.mrb[0].mxu0
      %v667 = vadd.f32 %v577, %v666
      %v668 = vpop.f32.mrb[0].mxu0
      %v669 = vpop.f32.mrb[0].mxu0
      %v670 = vpop.f32.mrb[0].mxu0
      %671 = vdwg.mxu0
      %v677 = vunpack.c.l.b16 %v565
      %v678 = vunpack.c.h.b16 %v565
      %v679 = vunpack.c.l.b16 %v566
      %v680 = vunpack.c.h.b16 %v566
      %v681 = vunpack.c.l.b16 %v567
      %v682 = vunpack.c.h.b16 %v567
      %v683 = vunpack.c.l.b16 %v568
      %v684 = vunpack.c.h.b16 %v568
      %v685 = vunpack.c.l.b16 %v569
      %v686 = vpack.c.b16 %v677, %v677
      %v687 = vpack.c.b16 %v678, %v678
      %v688 = vpack.c.b16 %v679, %v679
      %v689 = vpack.c.b16 %v680, %v680
      %v690 = vpack.c.b16 %v681, %v681
      %v691 = vpack.c.b16 %v682, %v682
      %v692 = vpack.c.b16 %v683, %v683
      %v693 = vpack.c.b16 %v684, %v684
      %v694 = vpack.c.b16 %v685, %v685
      %vm704 = vcmask 125952
      %705 = vst.msk [vmem:[%s288] sm:$0xf] %vm704, %v686
      %706 = vst.msk [vmem:[%s288 + $0x4] sm:$0xf] %vm704, %v687
      %707 = vst.msk [vmem:[%s288 + $0x8] sm:$0xf] %vm704, %v688
      %708 = vst.msk [vmem:[%s288 + $0xc] sm:$0xf] %vm704, %v689
      %709 = vst.msk [vmem:[%s288 + $0x10] sm:$0xf] %vm704, %v690
      %710 = vst.msk [vmem:[%s288 + $0x14] sm:$0xf] %vm704, %v691
      %711 = vst.msk [vmem:[%s288 + $0x18] sm:$0xf] %vm704, %v692
      %712 = vst.msk [vmem:[%s288 + $0x1c] sm:$0xf] %vm704, %v693
      %713 = vst.msk [vmem:[%s288 + $0x20] sm:$0xf] %vm704, %v694
      %vm714 = vcmask 64512
      %715 = vst.msk [vmem:[%s294] sm:$0xff] %vm714, %v635
      %716 = vst.msk [vmem:[%s294 + $0x8] sm:$0xff] %vm714, %v638
      %717 = vst.msk [vmem:[%s294 + $0x10] sm:$0xff] %vm714, %v643
      %718 = vst.msk [vmem:[%s294 + $0x18] sm:$0xff] %vm714, %v646
      %719 = vst.msk [vmem:[%s294 + $0x20] sm:$0xff] %vm714, %v651
      %720 = vst.msk [vmem:[%s294 + $0x28] sm:$0xff] %vm714, %v654
      %721 = vst.msk [vmem:[%s294 + $0x30] sm:$0xff] %vm714, %v659
      %722 = vst.msk [vmem:[%s294 + $0x38] sm:$0xff] %vm714, %v662
      %723 = vst.msk [vmem:[%s294 + $0x40] sm:$0xff] %vm714, %v667
      %s724 = smul.u32 9, %s19
      %p725 = scmp.lt.s32.totalorder %s724, 17
      %s726 = scalar_select %p725, %s724, 17
      %s727 = smul.addr %s726, 4
      %s728 = scalar_lea.vmem %s6, %s727
      %s729 = smul.u32 9, %s19
      %p730 = scmp.lt.s32.totalorder %s729, 17
      %s731 = scalar_select %p730, %s729, 17
      %s732 = smul.addr %s731, 8
      %s733 = scalar_lea.vmem %s7, %s732
      // Predicated region
      $region45: #{deeplabv3_forward.4} parent=43 // pred_check
        %p734 = pneg %p168
      $region46: #{deeplabv3_forward.4} parent=43 // pred_check_branch
        %736 = sbr.rel (%p734) target = $region48
      $region47: #{deeplabv3_forward.4} parent=43 // pred_region
        %s737 = smul.u32 9, %s19
      $region48: #{deeplabv3_forward.4} parent=43 // pred_fallthru
        _
      // Predicated region
      $region49: #{deeplabv3_forward.4} parent=43 // pred_check
        %p738 = pneg %p194
      $region50: #{deeplabv3_forward.4} parent=43 // pred_check_branch
        %740 = sbr.rel (%p738) target = $region52
      $region51: #{deeplabv3_forward.4} parent=43 // pred_region
        %s741 = smul.u32 9, %s19
      $region52: #{deeplabv3_forward.4} parent=43 // pred_fallthru
        _
    $region44: #{deeplabv3_forward.4} parent=5 // pred_fallthru
      _
    %p742 = scmp.le.s32.totalorder 2, %s14
    // Predicated region
    $region53: #{deeplabv3_forward.4} parent=5 // pred_check
      %p743 = pneg %p742
    $region54: #{deeplabv3_forward.4} parent=5 // pred_check_branch
      %745 = sbr.rel (%p743) target = $region56
    $region55: #{deeplabv3_forward.4} parent=5 // pred_region
      %s746 = ssub.s32 %s14, 2
      // Predicated region
      $region57: #{deeplabv3_forward.4} parent=55 // pred_check
        %p747 = pneg %p174
      $region58: #{deeplabv3_forward.4} parent=55 // pred_check_branch
        %749 = sbr.rel (%p747) target = $region60
      $region59: #{deeplabv3_forward.4} parent=55 // pred_region
        %s750 = smul.u32 9, %s20
        %p751 = scmp.lt.s32.totalorder %s750, 17
        %s752 = scalar_select %p751, %s750, 17
        %s753 = smul.addr %s752, 4
        %s754 = scalar_lea.vmem %s6, %s753
      $region60: #{deeplabv3_forward.4} parent=55 // pred_fallthru
        _
      // Predicated region
      $region61: #{deeplabv3_forward.4} parent=55 // pred_check
        %p755 = pneg %p200
      $region62: #{deeplabv3_forward.4} parent=55 // pred_check_branch
        %757 = sbr.rel (%p755) target = $region64
      $region63: #{deeplabv3_forward.4} parent=55 // pred_region
        %s758 = smul.u32 9, %s20
        %p759 = scmp.lt.s32.totalorder %s758, 17
        %s760 = scalar_select %p759, %s758, 17
        %s761 = smul.addr %s760, 8
        %s762 = scalar_lea.vmem %s7, %s761
      $region64: #{deeplabv3_forward.4} parent=55 // pred_fallthru
        _
    $region56: #{deeplabv3_forward.4} parent=5 // pred_fallthru
      _
  $region6: #{deeplabv3_forward.4} parent=0 // loop_footer
    %s18 = sadd.s32 1, %s14
  $region7: #{deeplabv3_forward.4} parent=0 // loop_footer_branch
    %13 = sbr.rel target = $region3
  $region8: #{deeplabv3_forward.4} parent=0 // loop_exit
    _

// kernel: deeplabv3_forward.5
$region0: #{deeplabv3_forward.5}
  #allocation0 [shape = 'u32[]', space=smem, size = 0x4, offset = 0x4, fixed_abs, tag = 'smem constant byte address 0x4 - core index']
  #allocation1 [shape = 'u32[144,128]{1,0:T(1,128)}', space=vmem, size = 0x12000, scoped, tag = 'internal scratch']
  #allocation2 [shape = 'f32[48,32]{1,0:T(8,128)}', space=vmem, size = 0x6000, scoped, tag = 'scratch operand']
  %s0 = inlined_call_operand.vmem [shape: bf16[40,96], index: 0, kind: input, shape index: {}]
  %s1 = inlined_call_operand.vmem [shape: bf16[96,32], index: 1, kind: input, shape index: {}]
  %s2 = inlined_call_operand.vmem [shape: bf16[96,32], index: 2, kind: input, shape index: {}]
  %s3 = inlined_call_operand.vmem [shape: f32[1,32], index: 3, kind: input, shape index: {}]
  %s4 = inlined_call_operand.vmem [shape: bf16[32,8], index: 4, kind: input, shape index: {}]
  %s5 = inlined_call_operand.vmem [shape: f32[1,8], index: 5, kind: input, shape index: {}]
  %s6 = inlined_call_operand.vmem [shape: f32[40,8], index: 6, kind: output, shape index: {}]
  %s7 = sld [smem:[#allocation0]]
  $region34: #{deeplabv3_forward.5} parent=0
    _
  %s9 = ssub.s32 1, %s7
  %s10 = scalar_select 0, %s9, %s7
  // Predicated region
  $region2: #{deeplabv3_forward.5} parent=0 // pred_check
    _
  $region3: #{deeplabv3_forward.5} parent=0 // pred_check_branch
    %12 = sbr.rel (0) target = $region5
  $region4: #{deeplabv3_forward.5} parent=0 // pred_region
    _
  $region5: #{deeplabv3_forward.5} parent=0 // pred_fallthru
    _
  // Predicated region
  $region6: #{deeplabv3_forward.5} parent=0 // pred_check
    _
  $region7: #{deeplabv3_forward.5} parent=0 // pred_check_branch
    %14 = sbr.rel (0) target = $region9
  $region8: #{deeplabv3_forward.5} parent=0 // pred_region
    _
  $region9: #{deeplabv3_forward.5} parent=0 // pred_fallthru
    _
  // Predicated region
  $region10: #{deeplabv3_forward.5} parent=0 // pred_check
    _
  $region11: #{deeplabv3_forward.5} parent=0 // pred_check_branch
    %16 = sbr.rel (0) target = $region13
  $region12: #{deeplabv3_forward.5} parent=0 // pred_region
    _
  $region13: #{deeplabv3_forward.5} parent=0 // pred_fallthru
    _
  // Predicated region
  $region14: #{deeplabv3_forward.5} parent=0 // pred_check
    _
  $region15: #{deeplabv3_forward.5} parent=0 // pred_check_branch
    %18 = sbr.rel (0) target = $region17
  $region16: #{deeplabv3_forward.5} parent=0 // pred_region
    _
  $region17: #{deeplabv3_forward.5} parent=0 // pred_fallthru
    _
  // Predicated region
  $region18: #{deeplabv3_forward.5} parent=0 // pred_check
    _
  $region19: #{deeplabv3_forward.5} parent=0 // pred_check_branch
    %20 = sbr.rel (0) target = $region21
  $region20: #{deeplabv3_forward.5} parent=0 // pred_region
    _
  $region21: #{deeplabv3_forward.5} parent=0 // pred_fallthru
    _
  // Predicated region
  $region22: #{deeplabv3_forward.5} parent=0 // pred_check
    _
  $region23: #{deeplabv3_forward.5} parent=0 // pred_check_branch
    %22 = sbr.rel (0) target = $region25
  $region24: #{deeplabv3_forward.5} parent=0 // pred_region
    _
  $region25: #{deeplabv3_forward.5} parent=0 // pred_fallthru
    _
  %v24 = vld [vmem:[%s0] sm:$0xf]
  %v25 = vld [vmem:[%s0 + $0x4] sm:$0xf]
  %v26 = vld [vmem:[%s0 + $0x8] sm:$0xf]
  %v27 = vld [vmem:[%s0 + $0xc] sm:$0xf]
  %v28 = vld [vmem:[%s0 + $0x10] sm:$0xf]
  %v29 = vld [vmem:[%s1] sm:$0xf]
  %v30 = vld [vmem:[%s1 + $0x4] sm:$0xf]
  %v31 = vld [vmem:[%s1 + $0x8] sm:$0xf]
  %v32 = vld [vmem:[%s1 + $0xc] sm:$0xf]
  %v33 = vld [vmem:[%s1 + $0x10] sm:$0xf]
  %v34 = vld [vmem:[%s1 + $0x14] sm:$0xf]
  %v35 = vld [vmem:[%s1 + $0x18] sm:$0xf]
  %v36 = vld [vmem:[%s1 + $0x1c] sm:$0xf]
  %v37 = vld [vmem:[%s1 + $0x20] sm:$0xf]
  %v38 = vld [vmem:[%s1 + $0x24] sm:$0xf]
  %v39 = vld [vmem:[%s1 + $0x28] sm:$0xf]
  %v40 = vld [vmem:[%s1 + $0x2c] sm:$0xf]
  %v41 = vld [vmem:[%s2] sm:$0xf]
  %v42 = vld [vmem:[%s2 + $0x4] sm:$0xf]
  %v43 = vld [vmem:[%s2 + $0x8] sm:$0xf]
  %v44 = vld [vmem:[%s2 + $0xc] sm:$0xf]
  %v45 = vld [vmem:[%s2 + $0x10] sm:$0xf]
  %v46 = vld [vmem:[%s2 + $0x14] sm:$0xf]
  %v47 = vld [vmem:[%s2 + $0x18] sm:$0xf]
  %v48 = vld [vmem:[%s2 + $0x1c] sm:$0xf]
  %v49 = vld [vmem:[%s2 + $0x20] sm:$0xf]
  %v50 = vld [vmem:[%s2 + $0x24] sm:$0xf]
  %v51 = vld [vmem:[%s2 + $0x28] sm:$0xf]
  %v52 = vld [vmem:[%s2 + $0x2c] sm:$0xf]
  %v58 = vunpack.c.l.b16 %v24
  %v59 = vunpack.c.l.b16 %v25
  %v60 = vunpack.c.l.b16 %v26
  %v61 = vunpack.c.l.b16 %v27
  %v62 = vunpack.c.l.b16 %v28
  %v63 = vpack.c.b16 %v59, %v58
  %v64 = vpack.c.b16 %v61, %v60
  %v65 = vpack.c.b16 %v62, %v62
  %v78 = vunpack.c.l.b16 %v41
  %v79 = vunpack.c.l.b16 %v42
  %v80 = vunpack.c.l.b16 %v43
  %v81 = vunpack.c.l.b16 %v44
  %v82 = vunpack.c.l.b16 %v45
  %v83 = vunpack.c.l.b16 %v46
  %v84 = vunpack.c.l.b16 %v47
  %v85 = vunpack.c.l.b16 %v48
  %v86 = vunpack.c.l.b16 %v49
  %v87 = vunpack.c.l.b16 %v50
  %v88 = vunpack.c.l.b16 %v51
  %v89 = vunpack.c.l.b16 %v52
  %v90 = vpack.c.b16 %v79, %v78
  %v91 = vpack.c.b16 %v81, %v80
  %v92 = vpack.c.b16 %v83, %v82
  %v93 = vpack.c.b16 %v85, %v84
  %v94 = vpack.c.b16 %v87, %v86
  %v95 = vpack.c.b16 %v89, %v88
  %vm102 = vcmask 785408
  %v104 = vsel %vm102, %v63, 0
  %v107 = vsel %vm102, %v64, 0
  %v110 = vsel %vm102, %v65, 0
  %112 = vmatprep.subr.bf16.mxu0 0
  %113 = vmatpush1.bf16.msra.mxu0 %v90
  %114 = vmatprep.subr.bf16.mxu0 0
  %115 = vmatpush1.bf16.msra.mxu0 %v91
  %116 = vmatprep.subr.bf16.mxu0 0
  %117 = vmatpush1.bf16.msra.mxu0 %v92
  %118 = vmatprep.subr.bf16.mxu0 0
  %119 = vmatpush1.bf16.msra.mxu0 %v93
  %120 = vmatprep.subr.bf16.mxu0 0
  %121 = vmatpush1.bf16.msra.mxu0 %v94
  %122 = vmatprep.subr.bf16.mxu0 0
  %123 = vmatpush1.bf16.msra.mxu0 %v95
  %124 = vmatprep.subr.bf16.mxu0 0
  %125 = vmatpush1.bf16.msra.mxu0 0
  %126 = vmatprep.subr.bf16.mxu0 0
  %127 = vmatpush1.bf16.msra.mxu0 0
  %128 = vmatprep.subr.bf16.mxu0 0
  %129 = vmatpush1.bf16.msra.mxu0 0
  %130 = vmatprep.subr.bf16.mxu0 0
  %131 = vmatpush1.bf16.msra.mxu0 0
  %132 = vmatprep.subr.bf16.mxu0 0
  %133 = vmatpush1.bf16.msra.mxu0 0
  %134 = vmatprep.subr.bf16.mxu0 0
  %135 = vmatpush1.bf16.msra.mxu0 0
  %136 = vmatprep.subr.bf16.mxu0 0
  %137 = vmatpush1.bf16.msra.mxu0 0
  %138 = vmatprep.subr.bf16.mxu0 0
  %139 = vmatpush1.bf16.msra.mxu0 0
  %140 = vmatprep.subr.bf16.mxu0 0
  %141 = vmatpush1.bf16.msra.mxu0 0
  %142 = vmatprep.subr.bf16.mxu0 0
  %143 = vmatpush1.bf16.msra.mxu0 0
  %144 = vmatprep.mubr.bf16.mxu0 0
  %145 = vmatmul.mubr.bf16.gmra.mrb[0].mxu0 %v104
  %v146 = vpop.f32.mrb[0].mxu0
  %v147 = vadd.f32 0.0, %v146
  %v148 = vpop.f32.mrb[0].mxu0
  %v149 = vpop.f32.mrb[0].mxu0
  %v150 = vadd.f32 0.0, %v149
  %v151 = vpop.f32.mrb[0].mxu0
  %152 = vmatprep.mubr.bf16.mxu0 0
  %153 = vmatmul.mubr.bf16.gmra.mrb[0].mxu0 %v107
  %v154 = vpop.f32.mrb[0].mxu0
  %v155 = vadd.f32 0.0, %v154
  %v156 = vpop.f32.mrb[0].mxu0
  %v157 = vpop.f32.mrb[0].mxu0
  %v158 = vadd.f32 0.0, %v157
  %v159 = vpop.f32.mrb[0].mxu0
  %160 = vmatprep.mubr.bf16.mxu0 0
  %161 = vmatmul.mubr.bf16.gmra.mrb[0].mxu0 %v110
  %v162 = vpop.f32.mrb[0].mxu0
  %v163 = vadd.f32 0.0, %v162
  %v164 = vpop.f32.mrb[0].mxu0
  %v165 = vpop.f32.mrb[0].mxu0
  %v166 = vpop.f32.mrb[0].mxu0
  %167 = vdwg.mxu0
  %vm168 = vcmask 261120
  %169 = vst.msk [vmem:[#allocation2] sm:$0xff] %vm168, %v147
  %170 = vst.msk [vmem:[#allocation2 + $0x8] sm:$0xff] %vm168, %v150
  %171 = vst.msk [vmem:[#allocation2 + $0x10] sm:$0xff] %vm168, %v155
  %172 = vst.msk [vmem:[#allocation2 + $0x18] sm:$0xff] %vm168, %v158
  %173 = vst.msk [vmem:[#allocation2 + $0x20] sm:$0xff] %vm168, %v163
  %174 = vst.msk [vmem:[#allocation2 + $0x28] sm:$0xff] %vm168, 0.0
  %v175 = vld [vmem:[#allocation2 + $0x1] sm:$0xff]
  %v176 = vld [vmem:[#allocation2 + $0x9] sm:$0xff]
  %v177 = vld [vmem:[#allocation2 + $0x11] sm:$0xff]
  %v178 = vld [vmem:[#allocation2 + $0x19] sm:$0xff]
  %v179 = vld [vmem:[#allocation2 + $0x21] sm:$0xff]
  %v192 = vunpack.c.l.b16 %v29
  %v193 = vunpack.c.l.b16 %v30
  %v194 = vunpack.c.l.b16 %v31
  %v195 = vunpack.c.l.b16 %v32
  %v196 = vunpack.c.l.b16 %v33
  %v197 = vunpack.c.l.b16 %v34
  %v198 = vunpack.c.l.b16 %v35
  %v199 = vunpack.c.l.b16 %v36
  %v200 = vunpack.c.l.b16 %v37
  %v201 = vunpack.c.l.b16 %v38
  %v202 = vunpack.c.l.b16 %v39
  %v203 = vunpack.c.l.b16 %v40
  %v204 = vpack.c.b16 %v193, %v192
  %v205 = vpack.c.b16 %v195, %v194
  %v206 = vpack.c.b16 %v197, %v196
  %v207 = vpack.c.b16 %v199, %v198
  %v208 = vpack.c.b16 %v201, %v200
  %v209 = vpack.c.b16 %v203, %v202
  %216 = vmatprep.subr.bf16.mxu0 0
  %217 = vmatpush1.bf16.msra.mxu0 %v204
  %218 = vmatprep.subr.bf16.mxu0 0
  %219 = vmatpush1.bf16.msra.mxu0 %v205
  %220 = vmatprep.subr.bf16.mxu0 0
  %221 = vmatpush1.bf16.msra.mxu0 %v206
  %222 = vmatprep.subr.bf16.mxu0 0
  %223 = vmatpush1.bf16.msra.mxu0 %v207
  %224 = vmatprep.subr.bf16.mxu0 0
  %225 = vmatpush1.bf16.msra.mxu0 %v208
  %226 = vmatprep.subr.bf16.mxu0 0
  %227 = vmatpush1.bf16.msra.mxu0 %v209
  %228 = vmatprep.subr.bf16.mxu0 0
  %229 = vmatpush1.bf16.msra.mxu0 0
  %230 = vmatprep.subr.bf16.mxu0 0
  %231 = vmatpush1.bf16.msra.mxu0 0
  %232 = vmatprep.subr.bf16.mxu0 0
  %233 = vmatpush1.bf16.msra.mxu0 0
  %234 = vmatprep.subr.bf16.mxu0 0
  %235 = vmatpush1.bf16.msra.mxu0 0
  %236 = vmatprep.subr.bf16.mxu0 0
  %237 = vmatpush1.bf16.msra.mxu0 0
  %238 = vmatprep.subr.bf16.mxu0 0
  %239 = vmatpush1.bf16.msra.mxu0 0
  %240 = vmatprep.subr.bf16.mxu0 0
  %241 = vmatpush1.bf16.msra.mxu0 0
  %242 = vmatprep.subr.bf16.mxu0 0
  %243 = vmatpush1.bf16.msra.mxu0 0
  %244 = vmatprep.subr.bf16.mxu0 0
  %245 = vmatpush1.bf16.msra.mxu0 0
  %246 = vmatprep.subr.bf16.mxu0 0
  %247 = vmatpush1.bf16.msra.mxu0 0
  %248 = vmatprep.mubr.bf16.mxu0 0
  %249 = vmatmul.mubr.bf16.gmra.mrb[0].mxu0 %v104
  %v250 = vpop.f32.mrb[0].mxu0
  %v251 = vadd.f32 %v175, %v250
  %v252 = vpop.f32.mrb[0].mxu0
  %v253 = vpop.f32.mrb[0].mxu0
  %v254 = vadd.f32 %v176, %v253
  %v255 = vpop.f32.mrb[0].mxu0
  %256 = vmatprep.mubr.bf16.mxu0 0
  %257 = vmatmul.mubr.bf16.gmra.mrb[0].mxu0 %v107
  %v258 = vpop.f32.mrb[0].mxu0
  %v259 = vadd.f32 %v177, %v258
  %v260 = vpop.f32.mrb[0].mxu0
  %v261 = vpop.f32.mrb[0].mxu0
  %v262 = vadd.f32 %v178, %v261
  %v263 = vpop.f32.mrb[0].mxu0
  %264 = vmatprep.mubr.bf16.mxu0 0
  %265 = vmatmul.mubr.bf16.gmra.mrb[0].mxu0 %v110
  %v266 = vpop.f32.mrb[0].mxu0
  %v267 = vadd.f32 %v179, %v266
  %v268 = vpop.f32.mrb[0].mxu0
  %v269 = vpop.f32.mrb[0].mxu0
  %v270 = vpop.f32.mrb[0].mxu0
  %271 = vdwg.mxu0
  %v272 = vld [vmem:[%s3] sm:$0x1]
  %v274 = vlaneseq
  %v275 = vshrl.u32 %v274, 7
  %v276 = vsub.s32 0, %v275
  %v277 = vrot.slane %v272, %v276
  %v279 = vadd.f32 %v251, %v277
  %v280 = vadd.f32 %v254, %v277
  %v281 = vadd.f32 %v259, %v277
  %v282 = vadd.f32 %v262, %v277
  %v283 = vadd.f32 %v267, %v277
  %v284 = vmax.f32 %v279, 0.0
  %v285 = vmax.f32 %v280, 0.0
  %v286 = vmax.f32 %v281, 0.0
  %v287 = vmax.f32 %v282, 0.0
  %v288 = vmax.f32 %v283, 0.0
  %v289 = vpack.c.bf16 %v285, %v284
  %v290 = vpack.c.bf16 %v287, %v286
  %v291 = vpack.c.bf16 %v288, %v288
  %v292 = vld [vmem:[%s4] sm:$0xf]
  %v293 = vld [vmem:[%s4 + $0x4] sm:$0xf]
  %v294 = vld [vmem:[%s4 + $0x8] sm:$0xf]
  %v295 = vld [vmem:[%s4 + $0xc] sm:$0xf]
  %v296 = vld [vmem:[%s5] sm:$0x1]
  %v298 = vlaneseq
  %v299 = vshrl.u32 %v298, 7
  %v300 = vsub.s32 0, %v299
  %v301 = vrot.slane %v296, %v300
  %v307 = vunpack.c.l.b16 %v292
  %v308 = vunpack.c.l.b16 %v293
  %v309 = vunpack.c.l.b16 %v294
  %v310 = vunpack.c.l.b16 %v295
  %v311 = vpack.c.b16 %v308, %v307
  %v312 = vpack.c.b16 %v310, %v309
  %v316 = vsel %vm168, %v289, 0
  %v319 = vsel %vm168, %v290, 0
  %v322 = vsel %vm168, %v291, 0
  %324 = vmatprep.subr.bf16.mxu0 0
  %325 = vmatpush1.bf16.msra.mxu0 %v311
  %326 = vmatprep.subr.bf16.mxu0 0
  %327 = vmatpush1.bf16.msra.mxu0 %v312
  %328 = vmatprep.subr.bf16.mxu0 0
  %329 = vmatpush1.bf16.msra.mxu0 0
  %330 = vmatprep.subr.bf16.mxu0 0
  %331 = vmatpush1.bf16.msra.mxu0 0
  %332 = vmatprep.subr.bf16.mxu0 0
  %333 = vmatpush1.bf16.msra.mxu0 0
  %334 = vmatprep.subr.bf16.mxu0 0
  %335 = vmatpush1.bf16.msra.mxu0 0
  %336 = vmatprep.subr.bf16.mxu0 0
  %337 = vmatpush1.bf16.msra.mxu0 0
  %338 = vmatprep.subr.bf16.mxu0 0
  %339 = vmatpush1.bf16.msra.mxu0 0
  %340 = vmatprep.subr.bf16.mxu0 0
  %341 = vmatpush1.bf16.msra.mxu0 0
  %342 = vmatprep.subr.bf16.mxu0 0
  %343 = vmatpush1.bf16.msra.mxu0 0
  %344 = vmatprep.subr.bf16.mxu0 0
  %345 = vmatpush1.bf16.msra.mxu0 0
  %346 = vmatprep.subr.bf16.mxu0 0
  %347 = vmatpush1.bf16.msra.mxu0 0
  %348 = vmatprep.subr.bf16.mxu0 0
  %349 = vmatpush1.bf16.msra.mxu0 0
  %350 = vmatprep.subr.bf16.mxu0 0
  %351 = vmatpush1.bf16.msra.mxu0 0
  %352 = vmatprep.subr.bf16.mxu0 0
  %353 = vmatpush1.bf16.msra.mxu0 0
  %354 = vmatprep.subr.bf16.mxu0 0
  %355 = vmatpush1.bf16.msra.mxu0 0
  %356 = vmatprep.mubr.bf16.mxu0 0
  %357 = vmatmul.mubr.bf16.gmra.mrb[0].mxu0 %v316
  %v358 = vpop.f32.mrb[0].mxu0
  %v359 = vadd.f32 %v301, %v358
  %v360 = vpop.f32.mrb[0].mxu0
  %v361 = vpop.f32.mrb[0].mxu0
  %v362 = vadd.f32 %v301, %v361
  %v363 = vpop.f32.mrb[0].mxu0
  %364 = vmatprep.mubr.bf16.mxu0 0
  %365 = vmatmul.mubr.bf16.gmra.mrb[0].mxu0 %v319
  %v366 = vpop.f32.mrb[0].mxu0
  %v367 = vadd.f32 %v301, %v366
  %v368 = vpop.f32.mrb[0].mxu0
  %v369 = vpop.f32.mrb[0].mxu0
  %v370 = vadd.f32 %v301, %v369
  %v371 = vpop.f32.mrb[0].mxu0
  %372 = vmatprep.mubr.bf16.mxu0 0
  %373 = vmatmul.mubr.bf16.gmra.mrb[0].mxu0 %v322
  %v374 = vpop.f32.mrb[0].mxu0
  %v375 = vadd.f32 %v301, %v374
  %v376 = vpop.f32.mrb[0].mxu0
  %v377 = vpop.f32.mrb[0].mxu0
  %v378 = vpop.f32.mrb[0].mxu0
  %379 = vdwg.mxu0
  %vm380 = vcmask 64512
  %381 = vst.msk [vmem:[%s6] sm:$0xff] %vm380, %v359
  %382 = vst.msk [vmem:[%s6 + $0x8] sm:$0xff] %vm380, %v362
  %383 = vst.msk [vmem:[%s6 + $0x10] sm:$0xff] %vm380, %v367
  %384 = vst.msk [vmem:[%s6 + $0x18] sm:$0xff] %vm380, %v370
  %385 = vst.msk [vmem:[%s6 + $0x20] sm:$0xff] %vm380, %v375
  // Predicated region
  $region26: #{deeplabv3_forward.5} parent=0 // pred_check
    _
  $region27: #{deeplabv3_forward.5} parent=0 // pred_check_branch
    %387 = sbr.rel (0) target = $region29
  $region28: #{deeplabv3_forward.5} parent=0 // pred_region
    _
  $region29: #{deeplabv3_forward.5} parent=0 // pred_fallthru
    _
  // Predicated region
  $region30: #{deeplabv3_forward.5} parent=0 // pred_check
    _
  $region31: #{deeplabv3_forward.5} parent=0 // pred_check_branch
    %389 = sbr.rel (0) target = $region33
  $region32: #{deeplabv3_forward.5} parent=0 // pred_region
    _
  $region33: #{deeplabv3_forward.5} parent=0 // pred_fallthru
    _

// kernel: deeplabv3_forward.6
$region0: #{deeplabv3_forward.6}
  #allocation0 [shape = 'u32[]', space=smem, size = 0x4, offset = 0x4, fixed_abs, tag = 'smem constant byte address 0x4 - core index']
  #allocation1 [shape = 'u32[144,128]{1,0:T(1,128)}', space=vmem, size = 0x12000, scoped, tag = 'internal scratch']
  %s0 = inlined_call_operand.vmem [shape: f32[16,4,4], index: 0, kind: input, shape index: {}]
  %s1 = inlined_call_operand.vmem [shape: f32[16,4], index: 1, kind: input, shape index: {}]
  %s2 = inlined_call_operand.vmem [shape: f32[4,16], index: 2, kind: input, shape index: {}]
  %s3 = inlined_call_operand.hbm [shape: f32[16,16,16], index: 3, kind: output, shape index: {}]
  %s4 = sld [smem:[#allocation0]]
  $region45: #{deeplabv3_forward.6} parent=0
    _
  %s6 = ssub.s32 1, %s4
  %s7 = scalar_select 0, %s6, %s4
  $region1: #{deeplabv3_forward.6} parent=0
    #allocation2 [shape = 'u8[16384]{0}', space=vmem, size = 0x4000, scoped, tag = 'output window, operand 0']
    #allocation3 [shape = 's32[2]{0}', space=sflag, size = 0x8, scoped, tag = 'scoped memory for deeplabv3_forward.6']
    %8 = vsyncpa [#allocation3], 0
    %s9 = scalar_lea.sflag [#allocation3], 1
    %10 = vsyncpa %s9, 0
    loop: start=0, step=1, limit=18
    $region2: #{deeplabv3_forward.6} parent=1 // loop_pre_header
      _
    $region3: #{deeplabv3_forward.6} parent=1 // loop_header
      %s12 = sphi 0, %s16
      %p13 = scmp.ge.s32.totalorder %s12, 18
      %s19 = sphi 0, %s31
      %s20 = sphi 0, %s27
      %s21 = sphi 0, %s19
      %s22 = sphi 0, %s20
      %s23 = sphi 0, %s21
      %s24 = sphi 0, %s22
      %s34 = sphi 0, %s36
      %s37 = sphi 0, %s34
      %s38 = sphi 0, %s37
      %s54 = sphi 0, %s38
      %s60 = sphi 0, %s62
      %s63 = sphi 0, %s60
      %s64 = sphi 0, %s63
      %s80 = sphi 0, %s64
      %s84 = sphi 0, %s84
      %s86 = sphi 0, %s84
      %s87 = sphi 0, %s86
      %s101 = sphi 0, %s87
      %s109 = sphi 0, %s111
      %s112 = sphi 0, %s109
      %s113 = sphi 0, %s112
      %s129 = sphi 0, %s113
    $region4: #{deeplabv3_forward.6} parent=1 // loop_header_branch
      %15 = sbr.rel (%p13) target = $region8
    $region5: #{deeplabv3_forward.6} parent=1 // loop_body
      %s17 = ssub.s32 %s12, 1
      %s18 = ssub.s32 %s12, 2
      %s25 = sadd.s32 1, %s20
      %p26 = scmp.ge.s32.totalorder %s25, 1
      %s27 = scalar_select %p26, 0, %s25
      %s28 = sadd.s32 1, %s19
      %s29 = scalar_select %p26, %s28, %s19
      %p30 = scmp.ge.s32.totalorder %s29, 16
      %s31 = scalar_select %p30, 0, %s29
      %s32 = ssub.s32 %s19, %s31
      %p33 = scmp.eq.s32.totalorder %s32, 0
      %s35 = sadd.s32 %s34, 1
      %s36 = scalar_select %p33, %s34, %s35
      %p39 = pneg %p33
      %p40 = scmp.eq.s32.totalorder %s12, 15
      %p41 = por %p39, %p40
      %p42 = scmp.ne.s32.totalorder %s34, %s37
      %p43 = scmp.eq.s32.totalorder %s12, 0
      %p44 = por %p42, %p43
      %p45 = scmp.ne.s32.totalorder %s34, %s37
      %p46 = scmp.eq.s32.totalorder %s17, 15
      %p47 = por %p45, %p46
      %p48 = scmp.ne.s32.totalorder %s37, %s38
      %p49 = scmp.eq.s32.totalorder %s17, 0
      %p50 = por %p48, %p49
      %p51 = scmp.ne.s32.totalorder %s37, %s38
      %p52 = scmp.eq.s32.totalorder %s18, 15
      %p53 = por %p51, %p52
      %p55 = scmp.ne.s32.totalorder %s38, %s54
      %p56 = scmp.eq.s32.totalorder %s18, 0
      %p57 = por %p55, %p56
      %s58 = ssub.s32 %s20, %s27
      %p59 = scmp.eq.s32.totalorder %s58, 0
      %s61 = sadd.s32 %s60, 1
      %s62 = scalar_select %p59, %s60, %s61
      %p65 = pneg %p59
      %p66 = scmp.eq.s32.totalorder %s12, 15
      %p67 = por %p65, %p66
      %p68 = scmp.ne.s32.totalorder %s60, %s63
      %p69 = scmp.eq.s32.totalorder %s12, 0
      %p70 = por %p68, %p69
      %p71 = scmp.ne.s32.totalorder %s60, %s63
      %p72 = scmp.eq.s32.totalorder %s17, 15
      %p73 = por %p71, %p72
      %p74 = scmp.ne.s32.totalorder %s63, %s64
      %p75 = scmp.eq.s32.totalorder %s17, 0
      %p76 = por %p74, %p75
      %p77 = scmp.ne.s32.totalorder %s63, %s64
      %p78 = scmp.eq.s32.totalorder %s18, 15
      %p79 = por %p77, %p78
      %p81 = scmp.ne.s32.totalorder %s64, %s80
      %p82 = scmp.eq.s32.totalorder %s18, 0
      %p83 = por %p81, %p82
      %s85 = sadd.s32 %s84, 1
      %p88 = scmp.eq.s32.totalorder %s12, 15
      %p89 = scmp.ne.s32.totalorder %s84, %s86
      %p90 = scmp.eq.s32.totalorder %s12, 0
      %p91 = por %p89, %p90
      %p92 = scmp.ne.s32.totalorder %s84, %s86
      %p93 = scmp.eq.s32.totalorder %s17, 15
      %p94 = por %p92, %p93
      %p95 = scmp.ne.s32.totalorder %s86, %s87
      %p96 = scmp.eq.s32.totalorder %s17, 0
      %p97 = por %p95, %p96
      %p98 = scmp.ne.s32.totalorder %s86, %s87
      %p99 = scmp.eq.s32.totalorder %s18, 15
      %p100 = por %p98, %p99
      %p102 = scmp.ne.s32.totalorder %s87, %s101
      %p103 = scmp.eq.s32.totalorder %s18, 0
      %p104 = por %p102, %p103
      %s105 = ssub.s32 %s19, %s31
      %s106 = ssub.s32 %s20, %s27
      %s107 = sor.u32 %s105, %s106
      %p108 = scmp.eq.s32.totalorder %s107, 0
      %s110 = sadd.s32 %s109, 1
      %s111 = scalar_select %p108, %s109, %s110
      %p114 = pneg %p108
      %p115 = scmp.eq.s32.totalorder %s12, 15
      %p116 = por %p114, %p115
      %p117 = scmp.ne.s32.totalorder %s109, %s112
      %p118 = scmp.eq.s32.totalorder %s12, 0
      %p119 = por %p117, %p118
      %p120 = scmp.ne.s32.totalorder %s109, %s112
      %p121 = scmp.eq.s32.totalorder %s17, 15
      %p122 = por %p120, %p121
      %p123 = scmp.ne.s32.totalorder %s112, %s113
      %p124 = scmp.eq.s32.totalorder %s17, 0
      %p125 = por %p123, %p124
      %p126 = scmp.ne.s32.totalorder %s112, %s113
      %p127 = scmp.eq.s32.totalorder %s18, 15
      %p128 = por %p126, %p127
      %p130 = scmp.ne.s32.totalorder %s113, %s129
      %p131 = scmp.eq.s32.totalorder %s18, 0
      %p132 = por %p130, %p131
      %p133 = scmp.le.s32.totalorder 1, %s12
      %p134 = scmp.lt.s32.totalorder %s12, 17
      %p135 = pnand %p133, %p134
      %p136 = pneg %p135
      // Predicated region
      $region9: #{deeplabv3_forward.6} parent=5 // pred_check
        _
      $region10: #{deeplabv3_forward.6} parent=5 // pred_check_branch
        %138 = sbr.rel (%p135) target = $region12
      $region11: #{deeplabv3_forward.6} parent=5 // pred_region
        %s139 = ssub.s32 %s12, 1
        // Predicated region
        $region13: #{deeplabv3_forward.6} parent=11 // pred_check
          %p140 = pneg %p76
        $region14: #{deeplabv3_forward.6} parent=11 // pred_check_branch
          %142 = sbr.rel (%p140) target = $region16
        $region15: #{deeplabv3_forward.6} parent=11 // pred_region
          %s143 = smul.u32 2, %s22
          %p144 = scmp.lt.s32.totalorder %s143, 1
          %s145 = scalar_select %p144, %s143, 1
          %s146 = smul.addr %s145, 8
          %s147 = scalar_lea.vmem %s1, %s146
          %s148 = smul.u32 2, %s22
        $region16: #{deeplabv3_forward.6} parent=11 // pred_fallthru
          _
        // Predicated region
        $region17: #{deeplabv3_forward.6} parent=11 // pred_check
          %p149 = pneg %p97
        $region18: #{deeplabv3_forward.6} parent=11 // pred_check_branch
          %151 = sbr.rel (%p149) target = $region20
        $region19: #{deeplabv3_forward.6} parent=11 // pred_region
          _
        $region20: #{deeplabv3_forward.6} parent=11 // pred_fallthru
          _
      $region12: #{deeplabv3_forward.6} parent=5 // pred_fallthru
        _
      %p152 = scmp.lt.s32.totalorder %s12, 16
      // Predicated region
      $region21: #{deeplabv3_forward.6} parent=5 // pred_check
        %p153 = pneg %p152
      $region22: #{deeplabv3_forward.6} parent=5 // pred_check_branch
        %155 = sbr.rel (%p153) target = $region24
      $region23: #{deeplabv3_forward.6} parent=5 // pred_region
        // Predicated region
        $region25: #{deeplabv3_forward.6} parent=23 // pred_check
          %p156 = pneg %p44
        $region26: #{deeplabv3_forward.6} parent=23 // pred_check_branch
          %158 = sbr.rel (%p156) target = $region28
        $region27: #{deeplabv3_forward.6} parent=23 // pred_region
          %p159 = scmp.lt.s32.totalorder %s19, 15
          %s160 = scalar_select %p159, %s19, 15
          %s161 = smul.addr %s160, 4
          %s162 = scalar_lea.vmem %s0, %s161
        $region28: #{deeplabv3_forward.6} parent=23 // pred_fallthru
          _
      $region24: #{deeplabv3_forward.6} parent=5 // pred_fallthru
        _
      %p163 = scmp.le.s32.totalorder 1, %s12
      %p164 = scmp.lt.s32.totalorder %s12, 17
      %p165 = pnand %p163, %p164
      %p166 = pneg %p165
      // Predicated region
      $region29: #{deeplabv3_forward.6} parent=5 // pred_check
        _
      $region30: #{deeplabv3_forward.6} parent=5 // pred_check_branch
        %168 = sbr.rel (%p165) target = $region32
      $region31: #{deeplabv3_forward.6} parent=5 // pred_region
        %s169 = ssub.s32 %s12, 1
        %p170 = scmp.lt.s32.totalorder %s21, 15
        %s171 = scalar_select %p170, %s21, 15
        %s172 = smul.addr %s171, 4
        %s173 = scalar_lea.vmem %s0, %s172
        %p174 = pneg %p50
        %p175 = pneg %p47
        %s176 = smul.u32 2, %s22
        %p177 = scmp.lt.s32.totalorder %s176, 1
        %s178 = scalar_select %p177, %s176, 1
        %s179 = smul.addr %s178, 8
        %s180 = scalar_lea.vmem %s1, %s179
        %p181 = pneg %p76
        %p182 = pneg %p73
        %p183 = pneg %p97
        %p184 = pneg %p94
        %p185 = pneg %p125
        %p186 = pneg %p122
        %s187 = sand.u32 %s112, 1
        %s188 = scalar_lea.sflag [#allocation3], %s187
        %s189 = sand.u32 %s112, 1
        %s190 = smul.addr %s189, 16
        %s191 = scalar_lea.vmem [#allocation2], %s190
        %p192 = scmp.lt.s32.totalorder %s21, 15
        %s193 = scalar_select %p192, %s21, 15
        %s194 = smul.addr %s193, 4
        %s195 = scalar_lea.vmem %s0, %s194
        %s196 = smul.u32 2, %s22
        %p197 = scmp.lt.s32.totalorder %s196, 1
        %s198 = scalar_select %p197, %s196, 1
        %s199 = smul.addr %s198, 8
        %s200 = scalar_lea.vmem %s1, %s199
        %s201 = smul.u32 2, %s22
        %s202 = smul.u32 2, %s22
        %v203 = vld [vmem:[%s200] sm:$0xff]
        %v204 = vld [vmem:[%s200 + $0x8] sm:$0xff]
        %v205 = vld [vmem:[%s195] sm:$0xf]
        %vm206 = vcmask 31744
        %v208 = vsel %vm206, %v203, 0
        %v211 = vsel %vm206, %v204, 0
        %vm213 = vcmask 1043456
        %v215 = vsel %vm213, %v205, 0
        %217 = vmatprep.subr.mxu0 0.0
        %218 = vmatpush1.msra.mxu0 %v215
        %219 = vmatprep.subr.mxu0 0.0
        %220 = vmatpush1.msra.mxu0 0.0
        %221 = vmatprep.subr.mxu0 0.0
        %222 = vmatpush1.msra.mxu0 0.0
        %223 = vmatprep.subr.mxu0 0.0
        %224 = vmatpush1.msra.mxu0 0.0
        %225 = vmatprep.subr.mxu0 0.0
        %226 = vmatpush1.msra.mxu0 0.0
        %227 = vmatprep.subr.mxu0 0.0
        %228 = vmatpush1.msra.mxu0 0.0
        %229 = vmatprep.subr.mxu0 0.0
        %230 = vmatpush1.msra.mxu0 0.0
        %231 = vmatprep.subr.mxu0 0.0
        %232 = vmatpush1.msra.mxu0 0.0
        %233 = vmatprep.subr.mxu0 0.0
        %234 = vmatpush1.msra.mxu0 0.0
        %235 = vmatprep.subr.mxu0 0.0
        %236 = vmatpush1.msra.mxu0 0.0
        %237 = vmatprep.subr.mxu0 0.0
        %238 = vmatpush1.msra.mxu0 0.0
        %239 = vmatprep.subr.mxu0 0.0
        %240 = vmatpush1.msra.mxu0 0.0
        %241 = vmatprep.subr.mxu0 0.0
        %242 = vmatpush1.msra.mxu0 0.0
        %243 = vmatprep.subr.mxu0 0.0
        %244 = vmatpush1.msra.mxu0 0.0
        %245 = vmatprep.subr.mxu0 0.0
        %246 = vmatpush1.msra.mxu0 0.0
        %247 = vmatprep.subr.mxu0 0.0
        %248 = vmatpush1.msra.mxu0 0.0
        %249 = vmatprep.subr.mxu0 0.0
        %250 = vmatpush1.msra.mxu0 0.0
        %251 = vmatprep.subr.mxu0 0.0
        %252 = vmatpush1.msra.mxu0 0.0
        %253 = vmatprep.subr.mxu0 0.0
        %254 = vmatpush1.msra.mxu0 0.0
        %255 = vmatprep.subr.mxu0 0.0
        %256 = vmatpush1.msra.mxu0 0.0
        %257 = vmatprep.subr.mxu0 0.0
        %258 = vmatpush1.msra.mxu0 0.0
        %259 = vmatprep.subr.mxu0 0.0
        %260 = vmatpush1.msra.mxu0 0.0
        %261 = vmatprep.subr.mxu0 0.0
        %262 = vmatpush1.msra.mxu0 0.0
        %263 = vmatprep.subr.mxu0 0.0
        %264 = vmatpush1.msra.mxu0 0.0
        %265 = vmatprep.subr.mxu0 0.0
        %266 = vmatpush1.msra.mxu0 0.0
        %267 = vmatprep.subr.mxu0 0.0
        %268 = vmatpush1.msra.mxu0 0.0
        %269 = vmatprep.subr.mxu0 0.0
        %270 = vmatpush1.msra.mxu0 0.0
        %271 = vmatprep.subr.mxu0 0.0
        %272 = vmatpush1.msra.mxu0 0.0
        %273 = vmatprep.subr.mxu0 0.0
        %274 = vmatpush1.msra.mxu0 0.0
        %275 = vmatprep.subr.mxu0 0.0
        %276 = vmatpush1.msra.mxu0 0.0
        %277 = vmatprep.subr.mxu0 0.0
        %278 = vmatpush1.msra.mxu0 0.0
        %279 = vmatprep.subr.mxu0 0.0
        %280 = vmatpush1.msra.mxu0 0.0
        %281 = vmatprep.mubr.f32.mxu0 0.0
        %282 = vmatmul.mubr.f32.gmra.mrb[0].mxu0 %v208
        %v283 = vpop.f32.mrb[0].mxu0
        %v284 = vadd.f32 0.0, %v283
        %v285 = vpop.f32.mrb[0].mxu0
        %286 = vmatprep.mubr.f32.mxu0 0.0
        %287 = vmatmul.mubr.f32.gmra.mrb[0].mxu0 %v211
        %v288 = vpop.f32.mrb[0].mxu0
        %v289 = vadd.f32 0.0, %v288
        %v290 = vpop.f32.mrb[0].mxu0
        %291 = vdwg.mxu0
        %v292 = vld [vmem:[%s2] sm:$0xf]
        %v294 = vsel %vm206, %v284, 0
        %v297 = vsel %vm206, %v289, 0
        %v300 = vsel %vm213, %v292, 0
        %302 = vmatprep.subr.mxu0 0.0
        %303 = vmatpush1.msra.mxu0 %v300
        %304 = vmatprep.subr.mxu0 0.0
        %305 = vmatpush1.msra.mxu0 0.0
        %306 = vmatprep.subr.mxu0 0.0
        %307 = vmatpush1.msra.mxu0 0.0
        %308 = vmatprep.subr.mxu0 0.0
        %309 = vmatpush1.msra.mxu0 0.0
        %310 = vmatprep.subr.mxu0 0.0
        %311 = vmatpush1.msra.mxu0 0.0
        %312 = vmatprep.subr.mxu0 0.0
        %313 = vmatpush1.msra.mxu0 0.0
        %314 = vmatprep.subr.mxu0 0.0
        %315 = vmatpush1.msra.mxu0 0.0
        %316 = vmatprep.subr.mxu0 0.0
        %317 = vmatpush1.msra.mxu0 0.0
        %318 = vmatprep.subr.mxu0 0.0
        %319 = vmatpush1.msra.mxu0 0.0
        %320 = vmatprep.subr.mxu0 0.0
        %321 = vmatpush1.msra.mxu0 0.0
        %322 = vmatprep.subr.mxu0 0.0
        %323 = vmatpush1.msra.mxu0 0.0
        %324 = vmatprep.subr.mxu0 0.0
        %325 = vmatpush1.msra.mxu0 0.0
        %326 = vmatprep.subr.mxu0 0.0
        %327 = vmatpush1.msra.mxu0 0.0
        %328 = vmatprep.subr.mxu0 0.0
        %329 = vmatpush1.msra.mxu0 0.0
        %330 = vmatprep.subr.mxu0 0.0
        %331 = vmatpush1.msra.mxu0 0.0
        %332 = vmatprep.subr.mxu0 0.0
        %333 = vmatpush1.msra.mxu0 0.0
        %334 = vmatprep.subr.mxu0 0.0
        %335 = vmatpush1.msra.mxu0 0.0
        %336 = vmatprep.subr.mxu0 0.0
        %337 = vmatpush1.msra.mxu0 0.0
        %338 = vmatprep.subr.mxu0 0.0
        %339 = vmatpush1.msra.mxu0 0.0
        %340 = vmatprep.subr.mxu0 0.0
        %341 = vmatpush1.msra.mxu0 0.0
        %342 = vmatprep.subr.mxu0 0.0
        %343 = vmatpush1.msra.mxu0 0.0
        %344 = vmatprep.subr.mxu0 0.0
        %345 = vmatpush1.msra.mxu0 0.0
        %346 = vmatprep.subr.mxu0 0.0
        %347 = vmatpush1.msra.mxu0 0.0
        %348 = vmatprep.subr.mxu0 0.0
        %349 = vmatpush1.msra.mxu0 0.0
        %350 = vmatprep.subr.mxu0 0.0
        %351 = vmatpush1.msra.mxu0 0.0
        %352 = vmatprep.subr.mxu0 0.0
        %353 = vmatpush1.msra.mxu0 0.0
        %354 = vmatprep.subr.mxu0 0.0
        %355 = vmatpush1.msra.mxu0 0.0
        %356 = vmatprep.subr.mxu0 0.0
        %357 = vmatpush1.msra.mxu0 0.0
        %358 = vmatprep.subr.mxu0 0.0
        %359 = vmatpush1.msra.mxu0 0.0
        %360 = vmatprep.subr.mxu0 0.0
        %361 = vmatpush1.msra.mxu0 0.0
        %362 = vmatprep.subr.mxu0 0.0
        %363 = vmatpush1.msra.mxu0 0.0
        %364 = vmatprep.subr.mxu0 0.0
        %365 = vmatpush1.msra.mxu0 0.0
        %366 = vmatprep.mubr.f32.mxu0 0.0
        %367 = vmatmul.mubr.f32.gmra.mrb[0].mxu0 %v294
        %v368 = vpop.f32.mrb[0].mxu0
        %v369 = vadd.f32 0.0, %v368
        %v370 = vpop.f32.mrb[0].mxu0
        %371 = vmatprep.mubr.f32.mxu0 0.0
        %372 = vmatmul.mubr.f32.gmra.mrb[0].mxu0 %v297
        %v373 = vpop.f32.mrb[0].mxu0
        %v374 = vadd.f32 0.0, %v373
        %v375 = vpop.f32.mrb[0].mxu0
        %376 = vdwg.mxu0
        %vm377 = vcmask 130048
        %378 = vst.msk [vmem:[%s191] sm:$0xff] %vm377, %v369
        %379 = vst.msk [vmem:[%s191 + $0x8] sm:$0xff] %vm377, %v374
        %s380 = sand.u32 %s112, 1
        %s381 = scalar_lea.sflag [#allocation3], %s380
        %s382 = sand.u32 %s112, 1
        %s383 = smul.addr %s382, 16
        %s384 = scalar_lea.vmem [#allocation2], %s383
        // Predicated region
        $region33: #{deeplabv3_forward.6} parent=31 // pred_check
          %p385 = pneg %p122
        $region34: #{deeplabv3_forward.6} parent=31 // pred_check_branch
          %387 = sbr.rel (%p385) target = $region36
        $region35: #{deeplabv3_forward.6} parent=31 // pred_region
          %s388 = smul.u32 2, %s22
          %s390 = ssub.s32 256, 256
          %391 = vsyncadd %s381, %s390
          %s392 = smul.addr %s21, 2
          %s393 = sadd.s32 %s388, %s392
          %s394 = smul.addr %s393, 128
          %s395 = scalar_lea.hbm %s3, %s394
          %s396 = sshll.u32 %s384, 4
          %s397 = int_to_ptr.vmem [resolvable:$true] %s396
          %402 = dma.vmem_to_hbm [thread:$0]  %s397, 256, %s395, %s381, 128, 128, 8
        $region36: #{deeplabv3_forward.6} parent=31 // pred_fallthru
          _
      $region32: #{deeplabv3_forward.6} parent=5 // pred_fallthru
        _
      %p403 = scmp.le.s32.totalorder 2, %s12
      // Predicated region
      $region37: #{deeplabv3_forward.6} parent=5 // pred_check
        %p404 = pneg %p403
      $region38: #{deeplabv3_forward.6} parent=5 // pred_check_branch
        %406 = sbr.rel (%p404) target = $region40
      $region39: #{deeplabv3_forward.6} parent=5 // pred_region
        %s407 = ssub.s32 %s12, 2
        // Predicated region
        $region41: #{deeplabv3_forward.6} parent=39 // pred_check
          %p408 = pneg %p128
        $region42: #{deeplabv3_forward.6} parent=39 // pred_check_branch
          %410 = sbr.rel (%p408) target = $region44
        $region43: #{deeplabv3_forward.6} parent=39 // pred_region
          %s411 = sand.u32 %s113, 1
          %s412 = scalar_lea.sflag [#allocation3], %s411
          %s413 = sand.u32 %s113, 1
          %s414 = smul.addr %s413, 16
          %s415 = scalar_lea.vmem [#allocation2], %s414
          %416 = dma.done %s412, 256
        $region44: #{deeplabv3_forward.6} parent=39 // pred_fallthru
          _
      $region40: #{deeplabv3_forward.6} parent=5 // pred_fallthru
        _
    $region6: #{deeplabv3_forward.6} parent=1 // loop_footer
      %s16 = sadd.s32 1, %s12
    $region7: #{deeplabv3_forward.6} parent=1 // loop_footer_branch
      %11 = sbr.rel target = $region3
    $region8: #{deeplabv3_forward.6} parent=1 // loop_exit
      _
    %417 = vsyncpa [#allocation3], 1
    %s418 = scalar_lea.sflag [#allocation3], 1
    %419 = vsyncpa %s418, 1

// kernel: deeplabv3_forward.7
$region0: #{deeplabv3_forward.7}
  #allocation0 [shape = 'u32[]', space=smem, size = 0x4, offset = 0x4, fixed_abs, tag = 'smem constant byte address 0x4 - core index']
  #allocation1 [shape = 'u32[144,128]{1,0:T(1,128)}', space=vmem, size = 0x12000, scoped, tag = 'internal scratch']
  %s0 = inlined_call_operand.vmem [shape: f32[16,8,8], index: 0, kind: input, shape index: {}]
  %s1 = inlined_call_operand.vmem [shape: f32[16,8], index: 1, kind: input, shape index: {}]
  %s2 = inlined_call_operand.vmem [shape: f32[8,16], index: 2, kind: input, shape index: {}]
  %s3 = inlined_call_operand.hbm [shape: f32[16,16,16], index: 3, kind: output, shape index: {}]
  %s4 = sld [smem:[#allocation0]]
  $region45: #{deeplabv3_forward.7} parent=0
    _
  %s6 = ssub.s32 1, %s4
  %s7 = scalar_select 0, %s6, %s4
  $region1: #{deeplabv3_forward.7} parent=0
    #allocation2 [shape = 'u8[16384]{0}', space=vmem, size = 0x4000, scoped, tag = 'output window, operand 0']
    #allocation3 [shape = 's32[2]{0}', space=sflag, size = 0x8, scoped, tag = 'scoped memory for deeplabv3_forward.7']
    %8 = vsyncpa [#allocation3], 0
    %s9 = scalar_lea.sflag [#allocation3], 1
    %10 = vsyncpa %s9, 0
    loop: start=0, step=1, limit=18
    $region2: #{deeplabv3_forward.7} parent=1 // loop_pre_header
      _
    $region3: #{deeplabv3_forward.7} parent=1 // loop_header
      %s12 = sphi 0, %s16
      %p13 = scmp.ge.s32.totalorder %s12, 18
      %s19 = sphi 0, %s31
      %s20 = sphi 0, %s27
      %s21 = sphi 0, %s19
      %s22 = sphi 0, %s20
      %s23 = sphi 0, %s21
      %s24 = sphi 0, %s22
      %s34 = sphi 0, %s36
      %s37 = sphi 0, %s34
      %s38 = sphi 0, %s37
      %s54 = sphi 0, %s38
      %s60 = sphi 0, %s62
      %s63 = sphi 0, %s60
      %s64 = sphi 0, %s63
      %s80 = sphi 0, %s64
      %s84 = sphi 0, %s84
      %s86 = sphi 0, %s84
      %s87 = sphi 0, %s86
      %s101 = sphi 0, %s87
      %s109 = sphi 0, %s111
      %s112 = sphi 0, %s109
      %s113 = sphi 0, %s112
      %s129 = sphi 0, %s113
    $region4: #{deeplabv3_forward.7} parent=1 // loop_header_branch
      %15 = sbr.rel (%p13) target = $region8
    $region5: #{deeplabv3_forward.7} parent=1 // loop_body
      %s17 = ssub.s32 %s12, 1
      %s18 = ssub.s32 %s12, 2
      %s25 = sadd.s32 1, %s20
      %p26 = scmp.ge.s32.totalorder %s25, 1
      %s27 = scalar_select %p26, 0, %s25
      %s28 = sadd.s32 1, %s19
      %s29 = scalar_select %p26, %s28, %s19
      %p30 = scmp.ge.s32.totalorder %s29, 16
      %s31 = scalar_select %p30, 0, %s29
      %s32 = ssub.s32 %s19, %s31
      %p33 = scmp.eq.s32.totalorder %s32, 0
      %s35 = sadd.s32 %s34, 1
      %s36 = scalar_select %p33, %s34, %s35
      %p39 = pneg %p33
      %p40 = scmp.eq.s32.totalorder %s12, 15
      %p41 = por %p39, %p40
      %p42 = scmp.ne.s32.totalorder %s34, %s37
      %p43 = scmp.eq.s32.totalorder %s12, 0
      %p44 = por %p42, %p43
      %p45 = scmp.ne.s32.totalorder %s34, %s37
      %p46 = scmp.eq.s32.totalorder %s17, 15
      %p47 = por %p45, %p46
      %p48 = scmp.ne.s32.totalorder %s37, %s38
      %p49 = scmp.eq.s32.totalorder %s17, 0
      %p50 = por %p48, %p49
      %p51 = scmp.ne.s32.totalorder %s37, %s38
      %p52 = scmp.eq.s32.totalorder %s18, 15
      %p53 = por %p51, %p52
      %p55 = scmp.ne.s32.totalorder %s38, %s54
      %p56 = scmp.eq.s32.totalorder %s18, 0
      %p57 = por %p55, %p56
      %s58 = ssub.s32 %s20, %s27
      %p59 = scmp.eq.s32.totalorder %s58, 0
      %s61 = sadd.s32 %s60, 1
      %s62 = scalar_select %p59, %s60, %s61
      %p65 = pneg %p59
      %p66 = scmp.eq.s32.totalorder %s12, 15
      %p67 = por %p65, %p66
      %p68 = scmp.ne.s32.totalorder %s60, %s63
      %p69 = scmp.eq.s32.totalorder %s12, 0
      %p70 = por %p68, %p69
      %p71 = scmp.ne.s32.totalorder %s60, %s63
      %p72 = scmp.eq.s32.totalorder %s17, 15
      %p73 = por %p71, %p72
      %p74 = scmp.ne.s32.totalorder %s63, %s64
      %p75 = scmp.eq.s32.totalorder %s17, 0
      %p76 = por %p74, %p75
      %p77 = scmp.ne.s32.totalorder %s63, %s64
      %p78 = scmp.eq.s32.totalorder %s18, 15
      %p79 = por %p77, %p78
      %p81 = scmp.ne.s32.totalorder %s64, %s80
      %p82 = scmp.eq.s32.totalorder %s18, 0
      %p83 = por %p81, %p82
      %s85 = sadd.s32 %s84, 1
      %p88 = scmp.eq.s32.totalorder %s12, 15
      %p89 = scmp.ne.s32.totalorder %s84, %s86
      %p90 = scmp.eq.s32.totalorder %s12, 0
      %p91 = por %p89, %p90
      %p92 = scmp.ne.s32.totalorder %s84, %s86
      %p93 = scmp.eq.s32.totalorder %s17, 15
      %p94 = por %p92, %p93
      %p95 = scmp.ne.s32.totalorder %s86, %s87
      %p96 = scmp.eq.s32.totalorder %s17, 0
      %p97 = por %p95, %p96
      %p98 = scmp.ne.s32.totalorder %s86, %s87
      %p99 = scmp.eq.s32.totalorder %s18, 15
      %p100 = por %p98, %p99
      %p102 = scmp.ne.s32.totalorder %s87, %s101
      %p103 = scmp.eq.s32.totalorder %s18, 0
      %p104 = por %p102, %p103
      %s105 = ssub.s32 %s19, %s31
      %s106 = ssub.s32 %s20, %s27
      %s107 = sor.u32 %s105, %s106
      %p108 = scmp.eq.s32.totalorder %s107, 0
      %s110 = sadd.s32 %s109, 1
      %s111 = scalar_select %p108, %s109, %s110
      %p114 = pneg %p108
      %p115 = scmp.eq.s32.totalorder %s12, 15
      %p116 = por %p114, %p115
      %p117 = scmp.ne.s32.totalorder %s109, %s112
      %p118 = scmp.eq.s32.totalorder %s12, 0
      %p119 = por %p117, %p118
      %p120 = scmp.ne.s32.totalorder %s109, %s112
      %p121 = scmp.eq.s32.totalorder %s17, 15
      %p122 = por %p120, %p121
      %p123 = scmp.ne.s32.totalorder %s112, %s113
      %p124 = scmp.eq.s32.totalorder %s17, 0
      %p125 = por %p123, %p124
      %p126 = scmp.ne.s32.totalorder %s112, %s113
      %p127 = scmp.eq.s32.totalorder %s18, 15
      %p128 = por %p126, %p127
      %p130 = scmp.ne.s32.totalorder %s113, %s129
      %p131 = scmp.eq.s32.totalorder %s18, 0
      %p132 = por %p130, %p131
      %p133 = scmp.le.s32.totalorder 1, %s12
      %p134 = scmp.lt.s32.totalorder %s12, 17
      %p135 = pnand %p133, %p134
      %p136 = pneg %p135
      // Predicated region
      $region9: #{deeplabv3_forward.7} parent=5 // pred_check
        _
      $region10: #{deeplabv3_forward.7} parent=5 // pred_check_branch
        %138 = sbr.rel (%p135) target = $region12
      $region11: #{deeplabv3_forward.7} parent=5 // pred_region
        %s139 = ssub.s32 %s12, 1
        // Predicated region
        $region13: #{deeplabv3_forward.7} parent=11 // pred_check
          %p140 = pneg %p76
        $region14: #{deeplabv3_forward.7} parent=11 // pred_check_branch
          %142 = sbr.rel (%p140) target = $region16
        $region15: #{deeplabv3_forward.7} parent=11 // pred_region
          %s143 = smul.u32 2, %s22
          %p144 = scmp.lt.s32.totalorder %s143, 1
          %s145 = scalar_select %p144, %s143, 1
          %s146 = smul.addr %s145, 8
          %s147 = scalar_lea.vmem %s1, %s146
          %s148 = smul.u32 2, %s22
        $region16: #{deeplabv3_forward.7} parent=11 // pred_fallthru
          _
        // Predicated region
        $region17: #{deeplabv3_forward.7} parent=11 // pred_check
          %p149 = pneg %p97
        $region18: #{deeplabv3_forward.7} parent=11 // pred_check_branch
          %151 = sbr.rel (%p149) target = $region20
        $region19: #{deeplabv3_forward.7} parent=11 // pred_region
          _
        $region20: #{deeplabv3_forward.7} parent=11 // pred_fallthru
          _
      $region12: #{deeplabv3_forward.7} parent=5 // pred_fallthru
        _
      %p152 = scmp.lt.s32.totalorder %s12, 16
      // Predicated region
      $region21: #{deeplabv3_forward.7} parent=5 // pred_check
        %p153 = pneg %p152
      $region22: #{deeplabv3_forward.7} parent=5 // pred_check_branch
        %155 = sbr.rel (%p153) target = $region24
      $region23: #{deeplabv3_forward.7} parent=5 // pred_region
        // Predicated region
        $region25: #{deeplabv3_forward.7} parent=23 // pred_check
          %p156 = pneg %p44
        $region26: #{deeplabv3_forward.7} parent=23 // pred_check_branch
          %158 = sbr.rel (%p156) target = $region28
        $region27: #{deeplabv3_forward.7} parent=23 // pred_region
          %p159 = scmp.lt.s32.totalorder %s19, 15
          %s160 = scalar_select %p159, %s19, 15
          %s161 = smul.addr %s160, 8
          %s162 = scalar_lea.vmem %s0, %s161
        $region28: #{deeplabv3_forward.7} parent=23 // pred_fallthru
          _
      $region24: #{deeplabv3_forward.7} parent=5 // pred_fallthru
        _
      %p163 = scmp.le.s32.totalorder 1, %s12
      %p164 = scmp.lt.s32.totalorder %s12, 17
      %p165 = pnand %p163, %p164
      %p166 = pneg %p165
      // Predicated region
      $region29: #{deeplabv3_forward.7} parent=5 // pred_check
        _
      $region30: #{deeplabv3_forward.7} parent=5 // pred_check_branch
        %168 = sbr.rel (%p165) target = $region32
      $region31: #{deeplabv3_forward.7} parent=5 // pred_region
        %s169 = ssub.s32 %s12, 1
        %p170 = scmp.lt.s32.totalorder %s21, 15
        %s171 = scalar_select %p170, %s21, 15
        %s172 = smul.addr %s171, 8
        %s173 = scalar_lea.vmem %s0, %s172
        %p174 = pneg %p50
        %p175 = pneg %p47
        %s176 = smul.u32 2, %s22
        %p177 = scmp.lt.s32.totalorder %s176, 1
        %s178 = scalar_select %p177, %s176, 1
        %s179 = smul.addr %s178, 8
        %s180 = scalar_lea.vmem %s1, %s179
        %p181 = pneg %p76
        %p182 = pneg %p73
        %p183 = pneg %p97
        %p184 = pneg %p94
        %p185 = pneg %p125
        %p186 = pneg %p122
        %s187 = sand.u32 %s112, 1
        %s188 = scalar_lea.sflag [#allocation3], %s187
        %s189 = sand.u32 %s112, 1
        %s190 = smul.addr %s189, 16
        %s191 = scalar_lea.vmem [#allocation2], %s190
        %p192 = scmp.lt.s32.totalorder %s21, 15
        %s193 = scalar_select %p192, %s21, 15
        %s194 = smul.addr %s193, 8
        %s195 = scalar_lea.vmem %s0, %s194
        %s196 = smul.u32 2, %s22
        %p197 = scmp.lt.s32.totalorder %s196, 1
        %s198 = scalar_select %p197, %s196, 1
        %s199 = smul.addr %s198, 8
        %s200 = scalar_lea.vmem %s1, %s199
        %s201 = smul.u32 2, %s22
        %s202 = smul.u32 2, %s22
        %v203 = vld [vmem:[%s200] sm:$0xff]
        %v204 = vld [vmem:[%s200 + $0x8] sm:$0xff]
        %v205 = vld [vmem:[%s195] sm:$0xff]
        %vm206 = vcmask 64512
        %v208 = vsel %vm206, %v203, 0
        %v211 = vsel %vm206, %v204, 0
        %213 = vmatprep.subr.mxu0 0.0
        %214 = vmatpush1.msra.mxu0 %v205
        %215 = vmatprep.subr.mxu0 0.0
        %216 = vmatpush1.msra.mxu0 0.0
        %217 = vmatprep.subr.mxu0 0.0
        %218 = vmatpush1.msra.mxu0 0.0
        %219 = vmatprep.subr.mxu0 0.0
        %220 = vmatpush1.msra.mxu0 0.0
        %221 = vmatprep.subr.mxu0 0.0
        %222 = vmatpush1.msra.mxu0 0.0
        %223 = vmatprep.subr.mxu0 0.0
        %224 = vmatpush1.msra.mxu0 0.0
        %225 = vmatprep.subr.mxu0 0.0
        %226 = vmatpush1.msra.mxu0 0.0
        %227 = vmatprep.subr.mxu0 0.0
        %228 = vmatpush1.msra.mxu0 0.0
        %229 = vmatprep.subr.mxu0 0.0
        %230 = vmatpush1.msra.mxu0 0.0
        %231 = vmatprep.subr.mxu0 0.0
        %232 = vmatpush1.msra.mxu0 0.0
        %233 = vmatprep.subr.mxu0 0.0
        %234 = vmatpush1.msra.mxu0 0.0
        %235 = vmatprep.subr.mxu0 0.0
        %236 = vmatpush1.msra.mxu0 0.0
        %237 = vmatprep.subr.mxu0 0.0
        %238 = vmatpush1.msra.mxu0 0.0
        %239 = vmatprep.subr.mxu0 0.0
        %240 = vmatpush1.msra.mxu0 0.0
        %241 = vmatprep.subr.mxu0 0.0
        %242 = vmatpush1.msra.mxu0 0.0
        %243 = vmatprep.subr.mxu0 0.0
        %244 = vmatpush1.msra.mxu0 0.0
        %245 = vmatprep.subr.mxu0 0.0
        %246 = vmatpush1.msra.mxu0 0.0
        %247 = vmatprep.subr.mxu0 0.0
        %248 = vmatpush1.msra.mxu0 0.0
        %249 = vmatprep.subr.mxu0 0.0
        %250 = vmatpush1.msra.mxu0 0.0
        %251 = vmatprep.subr.mxu0 0.0
        %252 = vmatpush1.msra.mxu0 0.0
        %253 = vmatprep.subr.mxu0 0.0
        %254 = vmatpush1.msra.mxu0 0.0
        %255 = vmatprep.subr.mxu0 0.0
        %256 = vmatpush1.msra.mxu0 0.0
        %257 = vmatprep.subr.mxu0 0.0
        %258 = vmatpush1.msra.mxu0 0.0
        %259 = vmatprep.subr.mxu0 0.0
        %260 = vmatpush1.msra.mxu0 0.0
        %261 = vmatprep.subr.mxu0 0.0
        %262 = vmatpush1.msra.mxu0 0.0
        %263 = vmatprep.subr.mxu0 0.0
        %264 = vmatpush1.msra.mxu0 0.0
        %265 = vmatprep.subr.mxu0 0.0
        %266 = vmatpush1.msra.mxu0 0.0
        %267 = vmatprep.subr.mxu0 0.0
        %268 = vmatpush1.msra.mxu0 0.0
        %269 = vmatprep.subr.mxu0 0.0
        %270 = vmatpush1.msra.mxu0 0.0
        %271 = vmatprep.subr.mxu0 0.0
        %272 = vmatpush1.msra.mxu0 0.0
        %273 = vmatprep.subr.mxu0 0.0
        %274 = vmatpush1.msra.mxu0 0.0
        %275 = vmatprep.subr.mxu0 0.0
        %276 = vmatpush1.msra.mxu0 0.0
        %277 = vmatprep.mubr.f32.mxu0 0.0
        %278 = vmatmul.mubr.f32.gmra.mrb[0].mxu0 %v208
        %v279 = vpop.f32.mrb[0].mxu0
        %v280 = vadd.f32 0.0, %v279
        %v281 = vpop.f32.mrb[0].mxu0
        %282 = vmatprep.mubr.f32.mxu0 0.0
        %283 = vmatmul.mubr.f32.gmra.mrb[0].mxu0 %v211
        %v284 = vpop.f32.mrb[0].mxu0
        %v285 = vadd.f32 0.0, %v284
        %v286 = vpop.f32.mrb[0].mxu0
        %287 = vdwg.mxu0
        %v288 = vld [vmem:[%s2] sm:$0xff]
        %v290 = vsel %vm206, %v280, 0
        %v293 = vsel %vm206, %v285, 0
        %295 = vmatprep.subr.mxu0 0.0
        %296 = vmatpush1.msra.mxu0 %v288
        %297 = vmatprep.subr.mxu0 0.0
        %298 = vmatpush1.msra.mxu0 0.0
        %299 = vmatprep.subr.mxu0 0.0
        %300 = vmatpush1.msra.mxu0 0.0
        %301 = vmatprep.subr.mxu0 0.0
        %302 = vmatpush1.msra.mxu0 0.0
        %303 = vmatprep.subr.mxu0 0.0
        %304 = vmatpush1.msra.mxu0 0.0
        %305 = vmatprep.subr.mxu0 0.0
        %306 = vmatpush1.msra.mxu0 0.0
        %307 = vmatprep.subr.mxu0 0.0
        %308 = vmatpush1.msra.mxu0 0.0
        %309 = vmatprep.subr.mxu0 0.0
        %310 = vmatpush1.msra.mxu0 0.0
        %311 = vmatprep.subr.mxu0 0.0
        %312 = vmatpush1.msra.mxu0 0.0
        %313 = vmatprep.subr.mxu0 0.0
        %314 = vmatpush1.msra.mxu0 0.0
        %315 = vmatprep.subr.mxu0 0.0
        %316 = vmatpush1.msra.mxu0 0.0
        %317 = vmatprep.subr.mxu0 0.0
        %318 = vmatpush1.msra.mxu0 0.0
        %319 = vmatprep.subr.mxu0 0.0
        %320 = vmatpush1.msra.mxu0 0.0
        %321 = vmatprep.subr.mxu0 0.0
        %322 = vmatpush1.msra.mxu0 0.0
        %323 = vmatprep.subr.mxu0 0.0
        %324 = vmatpush1.msra.mxu0 0.0
        %325 = vmatprep.subr.mxu0 0.0
        %326 = vmatpush1.msra.mxu0 0.0
        %327 = vmatprep.subr.mxu0 0.0
        %328 = vmatpush1.msra.mxu0 0.0
        %329 = vmatprep.subr.mxu0 0.0
        %330 = vmatpush1.msra.mxu0 0.0
        %331 = vmatprep.subr.mxu0 0.0
        %332 = vmatpush1.msra.mxu0 0.0
        %333 = vmatprep.subr.mxu0 0.0
        %334 = vmatpush1.msra.mxu0 0.0
        %335 = vmatprep.subr.mxu0 0.0
        %336 = vmatpush1.msra.mxu0 0.0
        %337 = vmatprep.subr.mxu0 0.0
        %338 = vmatpush1.msra.mxu0 0.0
        %339 = vmatprep.subr.mxu0 0.0
        %340 = vmatpush1.msra.mxu0 0.0
        %341 = vmatprep.subr.mxu0 0.0
        %342 = vmatpush1.msra.mxu0 0.0
        %343 = vmatprep.subr.mxu0 0.0
        %344 = vmatpush1.msra.mxu0 0.0
        %345 = vmatprep.subr.mxu0 0.0
        %346 = vmatpush1.msra.mxu0 0.0
        %347 = vmatprep.subr.mxu0 0.0
        %348 = vmatpush1.msra.mxu0 0.0
        %349 = vmatprep.subr.mxu0 0.0
        %350 = vmatpush1.msra.mxu0 0.0
        %351 = vmatprep.subr.mxu0 0.0
        %352 = vmatpush1.msra.mxu0 0.0
        %353 = vmatprep.subr.mxu0 0.0
        %354 = vmatpush1.msra.mxu0 0.0
        %355 = vmatprep.subr.mxu0 0.0
        %356 = vmatpush1.msra.mxu0 0.0
        %357 = vmatprep.subr.mxu0 0.0
        %358 = vmatpush1.msra.mxu0 0.0
        %359 = vmatprep.mubr.f32.mxu0 0.0
        %360 = vmatmul.mubr.f32.gmra.mrb[0].mxu0 %v290
        %v361 = vpop.f32.mrb[0].mxu0
        %v362 = vadd.f32 0.0, %v361
        %v363 = vpop.f32.mrb[0].mxu0
        %364 = vmatprep.mubr.f32.mxu0 0.0
        %365 = vmatmul.mubr.f32.gmra.mrb[0].mxu0 %v293
        %v366 = vpop.f32.mrb[0].mxu0
        %v367 = vadd.f32 0.0, %v366
        %v368 = vpop.f32.mrb[0].mxu0
        %369 = vdwg.mxu0
        %vm370 = vcmask 130048
        %371 = vst.msk [vmem:[%s191] sm:$0xff] %vm370, %v362
        %372 = vst.msk [vmem:[%s191 + $0x8] sm:$0xff] %vm370, %v367
        %s373 = sand.u32 %s112, 1
        %s374 = scalar_lea.sflag [#allocation3], %s373
        %s375 = sand.u32 %s112, 1
        %s376 = smul.addr %s375, 16
        %s377 = scalar_lea.vmem [#allocation2], %s376
        // Predicated region
        $region33: #{deeplabv3_forward.7} parent=31 // pred_check
          %p378 = pneg %p122
        $region34: #{deeplabv3_forward.7} parent=31 // pred_check_branch
          %380 = sbr.rel (%p378) target = $region36
        $region35: #{deeplabv3_forward.7} parent=31 // pred_region
          %s381 = smul.u32 2, %s22
          %s383 = ssub.s32 256, 256
          %384 = vsyncadd %s374, %s383
          %s385 = smul.addr %s21, 2
          %s386 = sadd.s32 %s381, %s385
          %s387 = smul.addr %s386, 128
          %s388 = scalar_lea.hbm %s3, %s387
          %s389 = sshll.u32 %s377, 4
          %s390 = int_to_ptr.vmem [resolvable:$true] %s389
          %395 = dma.vmem_to_hbm [thread:$0]  %s390, 256, %s388, %s374, 128, 128, 8
        $region36: #{deeplabv3_forward.7} parent=31 // pred_fallthru
          _
      $region32: #{deeplabv3_forward.7} parent=5 // pred_fallthru
        _
      %p396 = scmp.le.s32.totalorder 2, %s12
      // Predicated region
      $region37: #{deeplabv3_forward.7} parent=5 // pred_check
        %p397 = pneg %p396
      $region38: #{deeplabv3_forward.7} parent=5 // pred_check_branch
        %399 = sbr.rel (%p397) target = $region40
      $region39: #{deeplabv3_forward.7} parent=5 // pred_region
        %s400 = ssub.s32 %s12, 2
        // Predicated region
        $region41: #{deeplabv3_forward.7} parent=39 // pred_check
          %p401 = pneg %p128
        $region42: #{deeplabv3_forward.7} parent=39 // pred_check_branch
          %403 = sbr.rel (%p401) target = $region44
        $region43: #{deeplabv3_forward.7} parent=39 // pred_region
          %s404 = sand.u32 %s113, 1
          %s405 = scalar_lea.sflag [#allocation3], %s404
          %s406 = sand.u32 %s113, 1
          %s407 = smul.addr %s406, 16
          %s408 = scalar_lea.vmem [#allocation2], %s407
          %409 = dma.done %s405, 256
        $region44: #{deeplabv3_forward.7} parent=39 // pred_fallthru
          _
      $region40: #{deeplabv3_forward.7} parent=5 // pred_fallthru
        _
    $region6: #{deeplabv3_forward.7} parent=1 // loop_footer
      %s16 = sadd.s32 1, %s12
    $region7: #{deeplabv3_forward.7} parent=1 // loop_footer_branch
      %11 = sbr.rel target = $region3
    $region8: #{deeplabv3_forward.7} parent=1 // loop_exit
      _
    %410 = vsyncpa [#allocation3], 1
    %s411 = scalar_lea.sflag [#allocation3], 1
    %412 = vsyncpa %s411, 1

</llo_original>
